<compile_context>
chip_gen: v5e
topology: v5e:2x2
jax: 0.10.0
libtpu: 0.0.40
codegen_flags: <defaults>
</compile_context>

<pallas_src>
import functools

import jax
import jax.numpy as jnp
from jax import lax
from jax.experimental import pallas as pl
from jax.experimental.pallas import tpu as pltpu


def _round_up(n, m):
    return (n + m - 1) // m * m


def _choose_time_block(L, tl_max):
    """Largest time block <= tl_max; prefer one that divides L (no tail waste)."""
    tl_max = max(1, min(int(tl_max), L))
    if L % tl_max == 0:
        return tl_max
    best_div = next(tl for tl in range(tl_max, 0, -1) if L % tl == 0)
    # Take the divisor only if it does not shrink the block by more than 2x;
    # otherwise accept a padded tail (< tl_max wasted steps).
    return best_div if 2 * best_div >= tl_max else tl_max


def _rnn_kernel(pre_ref, h0_ref, wh_ref, hseq_ref, h_scratch, *,
                time_block, unroll):
    """One grid step = `time_block` recurrence steps for one batch block.

    Grid = (batch_blocks [parallel], time_blocks [arbitrary]).

    pre_ref  : (TL, BB, Hp) f32   hoisted input projection  x@Wi^T + (bi+bh)
    h0_ref   : (BB, Hp) f32       initial hidden state (this batch block)
    wh_ref   : (Hp, Hp)           Wh^T (padded; f32 or bf16)
    hseq_ref : (TL, BB, Hp)       output hidden-state slab (lane-dense)
    h_scratch: (BB, Hp) f32       running hidden state, persists across the
                                  sequential time grid axis
    """
    # (Re-)initialise the running hidden state from h0 at the first *time*
    # block of every batch block — keyed on the time program id so state
    # never leaks across batch shards.
    @pl.when(pl.program_id(1) == 0)
    def _():
        h_scratch[...] = h0_ref[...].astype(jnp.float32)

    def step(i, h):
        # Serial critical path: one MXU matmul + VPU add + EUP tanh per step.
        h_next = jnp.tanh(
            pre_ref[i]
            + jnp.dot(h.astype(wh_ref.dtype), wh_ref[...],
                      preferred_element_type=jnp.float32))
        hseq_ref[i] = h_next.astype(hseq_ref.dtype)
        return h_next

    h_scratch[...] = lax.fori_loop(0, time_block, step, h_scratch[...],
                                   unroll=unroll)


def rnn_forward(x, h0, Wi, bi, Wh, bh, *,
                wh_dtype=jnp.float32,
                batch_block=256,
                vmem_budget_bytes=20 * 1024 * 1024):
    """x: (L, B, dim), h0: (B, latent).
    Wi: (latent, dim), Wh: (latent, latent)  (PyTorch nn.Linear weight layout)
    bi, bh: (latent,).  Returns h_seq: (L, B, latent)."""
    L, B, dim = x.shape
    latent = h0.shape[1]
    out_dtype = x.dtype

    # ---- vreg/MXU-friendly padded sizes -----------------------------------
    BB = min(_round_up(batch_block, 8), _round_up(B, 8))   # batch block (sublanes)
    Bp = _round_up(B, BB)
    Hp = _round_up(latent, 128)                            # lanes -> unmasked vst

    # ---- Time blocking derived from the VMEM budget -----------------------
    itemsize_out = jnp.dtype(out_dtype).itemsize
    itemsize_wh = jnp.dtype(wh_dtype).itemsize
    step_bytes = BB * Hp * (4 + itemsize_out)              # pre (f32) + out, per step
    fixed_bytes = Hp * Hp * itemsize_wh + 2 * BB * Hp * 4  # Wh + h0 + scratch
    tl_max = (vmem_budget_bytes - 2 * fixed_bytes) // (2 * step_bytes)
    TL = _choose_time_block(L, tl_max)
    Lp = _round_up(L, TL)
    unroll = min(TL, 8)

    # ---- Hoisted, pre-padded input projection (one big MXU matmul) --------
    # Padding is applied to the *small* operands before the matmul, so `pre`
    # is born (L, Bp, Hp).  Padded lanes are exactly 0 (zero Wi^T columns and
    # zero bias), so padded hidden lanes stay tanh(0)=0 throughout; padded
    # batch rows are independent and sliced off at the end.
    x_f = x.astype(jnp.float32)
    if Bp != B:
        x_f = jnp.pad(x_f, ((0, 0), (0, Bp - B), (0, 0)))
    wi_t = jnp.pad(Wi.T.astype(jnp.float32), ((0, 0), (0, Hp - latent)))
    bias = jnp.pad((bi + bh).astype(jnp.float32), (0, Hp - latent))
    pre = (jnp.dot(x_f.reshape(L * Bp, dim), wi_t,
                   preferred_element_type=jnp.float32)
           + bias).reshape(L, Bp, Hp)
    if Lp != L:   # only when TL does not divide L: zero-pad the tail block
        pre = jnp.pad(pre, ((0, Lp - L), (0, 0), (0, 0)))

    h0_p = jnp.pad(h0.astype(jnp.float32), ((0, Bp - B), (0, Hp - latent)))
    wh_p = jnp.pad(Wh.T.astype(jnp.float32),
                   ((0, Hp - latent), (0, Hp - latent))).astype(wh_dtype)

    # ---- Explicit VMEM limit from the actual footprint (+headroom) --------
    slab_bytes = TL * step_bytes
    vmem_limit = min(max((2 * slab_bytes + 2 * fixed_bytes) * 5 // 4
                         + (2 << 20), 8 << 20), 64 << 20)

    kernel = functools.partial(_rnn_kernel, time_block=TL, unroll=unroll)
    grid = (Bp // BB, Lp // TL)

    def _call(single_buffer_invariants):
        inv = ({"pipeline_mode": pl.Buffered(1)}
               if single_buffer_invariants else {})
        return pl.pallas_call(
            kernel,
            out_shape=jax.ShapeDtypeStruct((Lp, Bp, Hp), out_dtype),
            grid_spec=pltpu.PrefetchScalarGridSpec(
                num_scalar_prefetch=0,
                grid=grid,
                in_specs=[
                    # streaming pre slab
                    pl.BlockSpec((TL, BB, Hp), lambda b, t: (t, b, 0)),
                    # per-batch-block h0 (time-invariant)
                    pl.BlockSpec((BB, Hp), lambda b, t: (b, 0), **inv),
                    # fully grid-invariant Wh^T
                    pl.BlockSpec((Hp, Hp), lambda b, t: (0, 0), **inv),
                ],
                out_specs=pl.BlockSpec((TL, BB, Hp), lambda b, t: (t, b, 0)),
                scratch_shapes=[pltpu.VMEM((BB, Hp), jnp.float32)],
            ),
            compiler_params=pltpu.CompilerParams(
                # Batch blocks are independent (megacore-parallel on v7x);
                # the time axis carries the recurrence -> must stay
                # sequential/"arbitrary".
                dimension_semantics=("parallel", "arbitrary"),
                vmem_limit_bytes=int(vmem_limit)),
        )(pre, h0_p, wh_p)

    try:
        h_seq_p = _call(True)
    except Exception:
        # pipeline_mode=pl.Buffered(1) unsupported on this JAX build — fall
        # back to default double buffering (costs VMEM only, not correctness).
        h_seq_p = _call(False)

    return h_seq_p[:L, :B, :latent]


def rnn_forward_ref(x, h0, Wi, bi, Wh, bh):
    """Pure-JAX reference mirroring the PyTorch loop."""
    def step(h, x_t):
        h_next = jnp.tanh(x_t @ Wi.T + bi + h @ Wh.T + bh)
        return h_next, h_next
    _, h_seq = lax.scan(step, h0, x)
    return h_seq


if __name__ == "__main__":
    L, B, dim, latent, output = 8, 4, 16, 32, 8

    key = jax.random.PRNGKey(0)
    kx, kh, k1, k2, k3, k4, k5, k6 = jax.random.split(key, 8)

    # Deterministic parameter init (PyTorch-like uniform +-1/sqrt(fan_in)).
    def init(k, shape, fan_in):
        bound = 1.0 / jnp.sqrt(fan_in)
        return jax.random.uniform(k, shape, jnp.float32, -bound, bound)

    Wi = init(k1, (latent, dim), dim)
    bi = init(k2, (latent,), dim)
    Wh = init(k3, (latent, latent), latent)
    bh = init(k4, (latent,), latent)
    Wd = init(k5, (output, latent), latent)   # decoder params, unused by forward()
    bd = init(k6, (output,), latent)
    # TODO(synk): decode()/Sigmoid head is not part of forward(); not implemented.

    x = jax.random.normal(kx, (L, B, dim), jnp.float32)
    h0 = jax.random.normal(kh, (B, latent), jnp.float32)

    ref = rnn_forward_ref(x, h0, Wi, bi, Wh, bh)

    # Exact f32 path (default) — strict check.
    h_seq = jax.block_until_ready(rnn_forward(x, h0, Wi, bi, Wh, bh))
    assert h_seq.shape == (L, B, latent)
    assert jnp.allclose(h_seq, ref, atol=1e-5, rtol=1e-5)

    # bf16 recurrent-weight fast path (native MXU rate on v6e/v7x, halves Wh
    # DMA/VMEM) — relaxed tolerance since Wh and h are rounded to bf16 on the
    # serial chain.
    h_bf16 = jax.block_until_ready(
        rnn_forward(x, h0, Wi, bi, Wh, bh, wh_dtype=jnp.bfloat16))
    assert jnp.allclose(h_bf16, ref, atol=1e-1, rtol=1e-1)

    print("KERNEL_OK")
</pallas_src>

<mosaic_0001>
module attributes {stable_mosaic.version = 11 : i64} {
  func.func @_rnn_kernel(%arg0: i32, %arg1: i32, %arg2: memref<8x8x128xf32, #tpu.memory_space<vmem>>, %arg3: memref<8x128xf32, #tpu.memory_space<vmem>>, %arg4: memref<128x128xf32, #tpu.memory_space<vmem>>, %arg5: memref<8x8x128xf32, #tpu.memory_space<vmem>>, %arg6: memref<8x128xf32, #tpu.memory_space<vmem>>) attributes {dimension_semantics = [#tpu.dimension_semantics<parallel>, #tpu.dimension_semantics<arbitrary>], iteration_bounds = array<i64: 1, 1>, scalar_prefetch = 0 : i64, scratch_operands = 1 : i64, tpu.core_type = #tpu.core_type<tc>, window_params = [{transform_indices = @transform_0, window_bounds = array<i64: 8, 8, 128>}, {pipeline_mode = #tpu.pipeline_mode<synchronous>, transform_indices = @transform_1, window_bounds = array<i64: 8, 128>}, {pipeline_mode = #tpu.pipeline_mode<synchronous>, transform_indices = @transform_2, window_bounds = array<i64: 128, 128>}, {transform_indices = @transform_3, window_bounds = array<i64: 8, 8, 128>}]} {
    %c0_i32 = arith.constant 0 : i32
    %0 = arith.cmpi eq, %arg1, %c0_i32 : i32
    %1 = arith.extui %0 : i1 to i32
    %c0_i32_0 = arith.constant 0 : i32
    %2 = arith.cmpi ne, %1, %c0_i32_0 : i32
    scf.if %2 {
      %c0_60 = arith.constant 0 : index
      %c0_61 = arith.constant 0 : index
      %93 = vector.load %arg3[%c0_60, %c0_61] : memref<8x128xf32, #tpu.memory_space<vmem>>, vector<8x128xf32>
      %c0_62 = arith.constant 0 : index
      %c0_63 = arith.constant 0 : index
      %94 = vector.load %arg6[%c0_62, %c0_63] : memref<8x128xf32, #tpu.memory_space<vmem>>, vector<8x128xf32>
      tpu.vector_store %arg6[%c0_62, %c0_63], %93 {strides = array<i32>} : memref<8x128xf32, #tpu.memory_space<vmem>>, vector<8x128xf32>,
    } else {
    }
    %c0 = arith.constant 0 : index
    %c0_1 = arith.constant 0 : index
    %3 = vector.load %arg6[%c0, %c0_1] : memref<8x128xf32, #tpu.memory_space<vmem>>, vector<8x128xf32>
    %c0_i32_2 = arith.constant 0 : i32
    %4 = arith.index_cast %c0_i32_2 : i32 to index
    %c0_3 = arith.constant 0 : index
    %c0_4 = arith.constant 0 : index
    %5 = vector.load %arg2[%4, %c0_3, %c0_4] : memref<8x8x128xf32, #tpu.memory_space<vmem>>, vector<1x8x128xf32>
    %6 = vector.shape_cast %5 : vector<1x8x128xf32> to vector<8x128xf32>
    %c0_5 = arith.constant 0 : index
    %c0_6 = arith.constant 0 : index
    %7 = vector.load %arg4[%c0_5, %c0_6] : memref<128x128xf32, #tpu.memory_space<vmem>>, vector<128x128xf32>
    %cst = arith.constant dense<0.000000e+00> : vector<8x128xf32>
    %8 = tpu.matmul %3, %7, %cst {dimension_numbers = #tpu.dot_dimension_numbers<[1], [0], [0], [1], [0, 0, 1, 1], [], []>} : vector<8x128xf32>, vector<128x128xf32>, vector<8x128xf32> -> vector<8x128xf32>
    %9 = arith.addf %6, %8 : vector<8x128xf32>
    %10 = math.tanh %9 : vector<8x128xf32>
    %11 = arith.index_cast %c0_i32_2 : i32 to index
    %c0_7 = arith.constant 0 : index
    %c0_8 = arith.constant 0 : index
    %12 = vector.load %arg5[%11, %c0_7, %c0_8] : memref<8x8x128xf32, #tpu.memory_space<vmem>>, vector<1x8x128xf32>
    %13 = vector.shape_cast %12 : vector<1x8x128xf32> to vector<8x128xf32>
    %14 = vector.shape_cast %10 : vector<8x128xf32> to vector<1x8x128xf32>
    tpu.vector_store %arg5[%11, %c0_7, %c0_8], %14 {strides = array<i32>} : memref<8x8x128xf32, #tpu.memory_space<vmem>>, vector<1x8x128xf32>,
    %c1_i32 = arith.constant 1 : i32
    %15 = arith.index_cast %c1_i32 : i32 to index
    %c0_9 = arith.constant 0 : index
    %c0_10 = arith.constant 0 : index
    %16 = vector.load %arg2[%15, %c0_9, %c0_10] : memref<8x8x128xf32, #tpu.memory_space<vmem>>, vector<1x8x128xf32>
    %17 = vector.shape_cast %16 : vector<1x8x128xf32> to vector<8x128xf32>
    %c0_11 = arith.constant 0 : index
    %c0_12 = arith.constant 0 : index
    %18 = vector.load %arg4[%c0_11, %c0_12] : memref<128x128xf32, #tpu.memory_space<vmem>>, vector<128x128xf32>
    %cst_13 = arith.constant dense<0.000000e+00> : vector<8x128xf32>
    %19 = tpu.matmul %10, %18, %cst_13 {dimension_numbers = #tpu.dot_dimension_numbers<[1], [0], [0], [1], [0, 0, 1, 1], [], []>} : vector<8x128xf32>, vector<128x128xf32>, vector<8x128xf32> -> vector<8x128xf32>
    %20 = arith.addf %17, %19 : vector<8x128xf32>
    %21 = math.tanh %20 : vector<8x128xf32>
    %22 = arith.index_cast %c1_i32 : i32 to index
    %c0_14 = arith.constant 0 : index
    %c0_15 = arith.constant 0 : index
    %23 = vector.load %arg5[%22, %c0_14, %c0_15] : memref<8x8x128xf32, #tpu.memory_space<vmem>>, vector<1x8x128xf32>
    %24 = vector.shape_cast %23 : vector<1x8x128xf32> to vector<8x128xf32>
    %25 = vector.shape_cast %21 : vector<8x128xf32> to vector<1x8x128xf32>
    tpu.vector_store %arg5[%22, %c0_14, %c0_15], %25 {strides = array<i32>} : memref<8x8x128xf32, #tpu.memory_space<vmem>>, vector<1x8x128xf32>,
    %c2_i32 = arith.constant 2 : i32
    %26 = arith.index_cast %c2_i32 : i32 to index
    %c0_16 = arith.constant 0 : index
    %c0_17 = arith.constant 0 : index
    %27 = vector.load %arg2[%26, %c0_16, %c0_17] : memref<8x8x128xf32, #tpu.memory_space<vmem>>, vector<1x8x128xf32>
    %28 = vector.shape_cast %27 : vector<1x8x128xf32> to vector<8x128xf32>
    %c0_18 = arith.constant 0 : index
    %c0_19 = arith.constant 0 : index
    %29 = vector.load %arg4[%c0_18, %c0_19] : memref<128x128xf32, #tpu.memory_space<vmem>>, vector<128x128xf32>
    %cst_20 = arith.constant dense<0.000000e+00> : vector<8x128xf32>
    %30 = tpu.matmul %21, %29, %cst_20 {dimension_numbers = #tpu.dot_dimension_numbers<[1], [0], [0], [1], [0, 0, 1, 1], [], []>} : vector<8x128xf32>, vector<128x128xf32>, vector<8x128xf32> -> vector<8x128xf32>
    %31 = arith.addf %28, %30 : vector<8x128xf32>
    %32 = math.tanh %31 : vector<8x128xf32>
    %33 = arith.index_cast %c2_i32 : i32 to index
    %c0_21 = arith.constant 0 : index
    %c0_22 = arith.constant 0 : index
    %34 = vector.load %arg5[%33, %c0_21, %c0_22] : memref<8x8x128xf32, #tpu.memory_space<vmem>>, vector<1x8x128xf32>
    %35 = vector.shape_cast %34 : vector<1x8x128xf32> to vector<8x128xf32>
    %36 = vector.shape_cast %32 : vector<8x128xf32> to vector<1x8x128xf32>
    tpu.vector_store %arg5[%33, %c0_21, %c0_22], %36 {strides = array<i32>} : memref<8x8x128xf32, #tpu.memory_space<vmem>>, vector<1x8x128xf32>,
    %c3_i32 = arith.constant 3 : i32
    %37 = arith.index_cast %c3_i32 : i32 to index
    %c0_23 = arith.constant 0 : index
    %c0_24 = arith.constant 0 : index
    %38 = vector.load %arg2[%37, %c0_23, %c0_24] : memref<8x8x128xf32, #tpu.memory_space<vmem>>, vector<1x8x128xf32>
    %39 = vector.shape_cast %38 : vector<1x8x128xf32> to vector<8x128xf32>
    %c0_25 = arith.constant 0 : index
    %c0_26 = arith.constant 0 : index
    %40 = vector.load %arg4[%c0_25, %c0_26] : memref<128x128xf32, #tpu.memory_space<vmem>>, vector<128x128xf32>
    %cst_27 = arith.constant dense<0.000000e+00> : vector<8x128xf32>
    %41 = tpu.matmul %32, %40, %cst_27 {dimension_numbers = #tpu.dot_dimension_numbers<[1], [0], [0], [1], [0, 0, 1, 1], [], []>} : vector<8x128xf32>, vector<128x128xf32>, vector<8x128xf32> -> vector<8x128xf32>
    %42 = arith.addf %39, %41 : vector<8x128xf32>
    %43 = math.tanh %42 : vector<8x128xf32>
    %44 = arith.index_cast %c3_i32 : i32 to index
    %c0_28 = arith.constant 0 : index
    %c0_29 = arith.constant 0 : index
    %45 = vector.load %arg5[%44, %c0_28, %c0_29] : memref<8x8x128xf32, #tpu.memory_space<vmem>>, vector<1x8x128xf32>
    %46 = vector.shape_cast %45 : vector<1x8x128xf32> to vector<8x128xf32>
    %47 = vector.shape_cast %43 : vector<8x128xf32> to vector<1x8x128xf32>
    tpu.vector_store %arg5[%44, %c0_28, %c0_29], %47 {strides = array<i32>} : memref<8x8x128xf32, #tpu.memory_space<vmem>>, vector<1x8x128xf32>,
    %c4_i32 = arith.constant 4 : i32
    %48 = arith.index_cast %c4_i32 : i32 to index
    %c0_30 = arith.constant 0 : index
    %c0_31 = arith.constant 0 : index
    %49 = vector.load %arg2[%48, %c0_30, %c0_31] : memref<8x8x128xf32, #tpu.memory_space<vmem>>, vector<1x8x128xf32>
    %50 = vector.shape_cast %49 : vector<1x8x128xf32> to vector<8x128xf32>
    %c0_32 = arith.constant 0 : index
    %c0_33 = arith.constant 0 : index
    %51 = vector.load %arg4[%c0_32, %c0_33] : memref<128x128xf32, #tpu.memory_space<vmem>>, vector<128x128xf32>
    %cst_34 = arith.constant dense<0.000000e+00> : vector<8x128xf32>
    %52 = tpu.matmul %43, %51, %cst_34 {dimension_numbers = #tpu.dot_dimension_numbers<[1], [0], [0], [1], [0, 0, 1, 1], [], []>} : vector<8x128xf32>, vector<128x128xf32>, vector<8x128xf32> -> vector<8x128xf32>
    %53 = arith.addf %50, %52 : vector<8x128xf32>
    %54 = math.tanh %53 : vector<8x128xf32>
    %55 = arith.index_cast %c4_i32 : i32 to index
    %c0_35 = arith.constant 0 : index
    %c0_36 = arith.constant 0 : index
    %56 = vector.load %arg5[%55, %c0_35, %c0_36] : memref<8x8x128xf32, #tpu.memory_space<vmem>>, vector<1x8x128xf32>
    %57 = vector.shape_cast %56 : vector<1x8x128xf32> to vector<8x128xf32>
    %58 = vector.shape_cast %54 : vector<8x128xf32> to vector<1x8x128xf32>
    tpu.vector_store %arg5[%55, %c0_35, %c0_36], %58 {strides = array<i32>} : memref<8x8x128xf32, #tpu.memory_space<vmem>>, vector<1x8x128xf32>,
    %c5_i32 = arith.constant 5 : i32
    %59 = arith.index_cast %c5_i32 : i32 to index
    %c0_37 = arith.constant 0 : index
    %c0_38 = arith.constant 0 : index
    %60 = vector.load %arg2[%59, %c0_37, %c0_38] : memref<8x8x128xf32, #tpu.memory_space<vmem>>, vector<1x8x128xf32>
    %61 = vector.shape_cast %60 : vector<1x8x128xf32> to vector<8x128xf32>
    %c0_39 = arith.constant 0 : index
    %c0_40 = arith.constant 0 : index
    %62 = vector.load %arg4[%c0_39, %c0_40] : memref<128x128xf32, #tpu.memory_space<vmem>>, vector<128x128xf32>
    %cst_41 = arith.constant dense<0.000000e+00> : vector<8x128xf32>
    %63 = tpu.matmul %54, %62, %cst_41 {dimension_numbers = #tpu.dot_dimension_numbers<[1], [0], [0], [1], [0, 0, 1, 1], [], []>} : vector<8x128xf32>, vector<128x128xf32>, vector<8x128xf32> -> vector<8x128xf32>
    %64 = arith.addf %61, %63 : vector<8x128xf32>
    %65 = math.tanh %64 : vector<8x128xf32>
    %66 = arith.index_cast %c5_i32 : i32 to index
    %c0_42 = arith.constant 0 : index
    %c0_43 = arith.constant 0 : index
    %67 = vector.load %arg5[%66, %c0_42, %c0_43] : memref<8x8x128xf32, #tpu.memory_space<vmem>>, vector<1x8x128xf32>
    %68 = vector.shape_cast %67 : vector<1x8x128xf32> to vector<8x128xf32>
    %69 = vector.shape_cast %65 : vector<8x128xf32> to vector<1x8x128xf32>
    tpu.vector_store %arg5[%66, %c0_42, %c0_43], %69 {strides = array<i32>} : memref<8x8x128xf32, #tpu.memory_space<vmem>>, vector<1x8x128xf32>,
    %c6_i32 = arith.constant 6 : i32
    %70 = arith.index_cast %c6_i32 : i32 to index
    %c0_44 = arith.constant 0 : index
    %c0_45 = arith.constant 0 : index
    %71 = vector.load %arg2[%70, %c0_44, %c0_45] : memref<8x8x128xf32, #tpu.memory_space<vmem>>, vector<1x8x128xf32>
    %72 = vector.shape_cast %71 : vector<1x8x128xf32> to vector<8x128xf32>
    %c0_46 = arith.constant 0 : index
    %c0_47 = arith.constant 0 : index
    %73 = vector.load %arg4[%c0_46, %c0_47] : memref<128x128xf32, #tpu.memory_space<vmem>>, vector<128x128xf32>
    %cst_48 = arith.constant dense<0.000000e+00> : vector<8x128xf32>
    %74 = tpu.matmul %65, %73, %cst_48 {dimension_numbers = #tpu.dot_dimension_numbers<[1], [0], [0], [1], [0, 0, 1, 1], [], []>} : vector<8x128xf32>, vector<128x128xf32>, vector<8x128xf32> -> vector<8x128xf32>
    %75 = arith.addf %72, %74 : vector<8x128xf32>
    %76 = math.tanh %75 : vector<8x128xf32>
    %77 = arith.index_cast %c6_i32 : i32 to index
    %c0_49 = arith.constant 0 : index
    %c0_50 = arith.constant 0 : index
    %78 = vector.load %arg5[%77, %c0_49, %c0_50] : memref<8x8x128xf32, #tpu.memory_space<vmem>>, vector<1x8x128xf32>
    %79 = vector.shape_cast %78 : vector<1x8x128xf32> to vector<8x128xf32>
    %80 = vector.shape_cast %76 : vector<8x128xf32> to vector<1x8x128xf32>
    tpu.vector_store %arg5[%77, %c0_49, %c0_50], %80 {strides = array<i32>} : memref<8x8x128xf32, #tpu.memory_space<vmem>>, vector<1x8x128xf32>,
    %c7_i32 = arith.constant 7 : i32
    %81 = arith.index_cast %c7_i32 : i32 to index
    %c0_51 = arith.constant 0 : index
    %c0_52 = arith.constant 0 : index
    %82 = vector.load %arg2[%81, %c0_51, %c0_52] : memref<8x8x128xf32, #tpu.memory_space<vmem>>, vector<1x8x128xf32>
    %83 = vector.shape_cast %82 : vector<1x8x128xf32> to vector<8x128xf32>
    %c0_53 = arith.constant 0 : index
    %c0_54 = arith.constant 0 : index
    %84 = vector.load %arg4[%c0_53, %c0_54] : memref<128x128xf32, #tpu.memory_space<vmem>>, vector<128x128xf32>
    %cst_55 = arith.constant dense<0.000000e+00> : vector<8x128xf32>
    %85 = tpu.matmul %76, %84, %cst_55 {dimension_numbers = #tpu.dot_dimension_numbers<[1], [0], [0], [1], [0, 0, 1, 1], [], []>} : vector<8x128xf32>, vector<128x128xf32>, vector<8x128xf32> -> vector<8x128xf32>
    %86 = arith.addf %83, %85 : vector<8x128xf32>
    %87 = math.tanh %86 : vector<8x128xf32>
    %88 = arith.index_cast %c7_i32 : i32 to index
    %c0_56 = arith.constant 0 : index
    %c0_57 = arith.constant 0 : index
    %89 = vector.load %arg5[%88, %c0_56, %c0_57] : memref<8x8x128xf32, #tpu.memory_space<vmem>>, vector<1x8x128xf32>
    %90 = vector.shape_cast %89 : vector<1x8x128xf32> to vector<8x128xf32>
    %91 = vector.shape_cast %87 : vector<8x128xf32> to vector<1x8x128xf32>
    tpu.vector_store %arg5[%88, %c0_56, %c0_57], %91 {strides = array<i32>} : memref<8x8x128xf32, #tpu.memory_space<vmem>>, vector<1x8x128xf32>,
    %c8_i32 = arith.constant 8 : i32
    %c0_58 = arith.constant 0 : index
    %c0_59 = arith.constant 0 : index
    %92 = vector.load %arg6[%c0_58, %c0_59] : memref<8x128xf32, #tpu.memory_space<vmem>>, vector<8x128xf32>
    tpu.vector_store %arg6[%c0_58, %c0_59], %87 {strides = array<i32>} : memref<8x128xf32, #tpu.memory_space<vmem>>, vector<8x128xf32>,
    return
  }
  func.func @transform_0(%arg0: i32, %arg1: i32) -> (i32, i32, i32) {
    %c0_i32 = arith.constant 0 : i32
    %c0_i32_0 = arith.constant 0 : i32
    return %arg1, %arg0, %c0_i32 : i32, i32, i32
  }
  func.func @transform_1(%arg0: i32, %arg1: i32) -> (i32, i32) {
    %c0_i32 = arith.constant 0 : i32
    %c0_i32_0 = arith.constant 0 : i32
    return %arg0, %c0_i32 : i32, i32
  }
  func.func @transform_2(%arg0: i32, %arg1: i32) -> (i32, i32) {
    %c0_i32 = arith.constant 0 : i32
    %c0_i32_0 = arith.constant 0 : i32
    %c0_i32_1 = arith.constant 0 : i32
    return %c0_i32, %c0_i32_0 : i32, i32
  }
  func.func @transform_3(%arg0: i32, %arg1: i32) -> (i32, i32, i32) {
    %c0_i32 = arith.constant 0 : i32
    %c0_i32_0 = arith.constant 0 : i32
    return %arg1, %arg0, %c0_i32 : i32, i32, i32
  }
}

module attributes {stable_mosaic.version = 11 : i64} {
  func.func @_rnn_kernel(%arg0: i32, %arg1: i32, %arg2: memref<8x8x128xf32, #tpu.memory_space<vmem>>, %arg3: memref<8x128xf32, #tpu.memory_space<vmem>>, %arg4: memref<128x128xf32, #tpu.memory_space<vmem>>, %arg5: memref<8x8x128xf32, #tpu.memory_space<vmem>>, %arg6: memref<8x128xf32, #tpu.memory_space<vmem>>) attributes {dimension_semantics = [#tpu.dimension_semantics<parallel>, #tpu.dimension_semantics<arbitrary>], iteration_bounds = array<i64: 1, 1>, scalar_prefetch = 0 : i64, scratch_operands = 1 : i64, tpu.core_type = #tpu.core_type<tc>, window_params = [{transform_indices = @transform_0, window_bounds = array<i64: 8, 8, 128>}, {transform_indices = @transform_1, window_bounds = array<i64: 8, 128>}, {pipeline_mode = #tpu.pipeline_mode<synchronous>, transform_indices = @transform_2, window_bounds = array<i64: 128, 128>}, {transform_indices = @transform_3, window_bounds = array<i64: 8, 8, 128>}]} {
    %c0_i32 = arith.constant 0 : i32
    %0 = arith.cmpi eq, %arg1, %c0_i32 : i32
    %1 = arith.extui %0 : i1 to i32
    %c0_i32_0 = arith.constant 0 : i32
    %2 = arith.cmpi ne, %1, %c0_i32_0 : i32
    scf.if %2 {
      %c0_60 = arith.constant 0 : index
      %c0_61 = arith.constant 0 : index
      %93 = vector.load %arg3[%c0_60, %c0_61] : memref<8x128xf32, #tpu.memory_space<vmem>>, vector<8x128xf32>
      %c0_62 = arith.constant 0 : index
      %c0_63 = arith.constant 0 : index
      %94 = vector.load %arg6[%c0_62, %c0_63] : memref<8x128xf32, #tpu.memory_space<vmem>>, vector<8x128xf32>
      tpu.vector_store %arg6[%c0_62, %c0_63], %93 {strides = array<i32>} : memref<8x128xf32, #tpu.memory_space<vmem>>, vector<8x128xf32>,
    } else {
    }
    %c0 = arith.constant 0 : index
    %c0_1 = arith.constant 0 : index
    %3 = vector.load %arg6[%c0, %c0_1] : memref<8x128xf32, #tpu.memory_space<vmem>>, vector<8x128xf32>
    %c0_i32_2 = arith.constant 0 : i32
    %4 = arith.index_cast %c0_i32_2 : i32 to index
    %c0_3 = arith.constant 0 : index
    %c0_4 = arith.constant 0 : index
    %5 = vector.load %arg2[%4, %c0_3, %c0_4] : memref<8x8x128xf32, #tpu.memory_space<vmem>>, vector<1x8x128xf32>
    %6 = vector.shape_cast %5 : vector<1x8x128xf32> to vector<8x128xf32>
    %c0_5 = arith.constant 0 : index
    %c0_6 = arith.constant 0 : index
    %7 = vector.load %arg4[%c0_5, %c0_6] : memref<128x128xf32, #tpu.memory_space<vmem>>, vector<128x128xf32>
    %cst = arith.constant dense<0.000000e+00> : vector<8x128xf32>
    %8 = tpu.matmul %3, %7, %cst {dimension_numbers = #tpu.dot_dimension_numbers<[1], [0], [0], [1], [0, 0, 1, 1], [], []>} : vector<8x128xf32>, vector<128x128xf32>, vector<8x128xf32> -> vector<8x128xf32>
    %9 = arith.addf %6, %8 : vector<8x128xf32>
    %10 = math.tanh %9 : vector<8x128xf32>
    %11 = arith.index_cast %c0_i32_2 : i32 to index
    %c0_7 = arith.constant 0 : index
    %c0_8 = arith.constant 0 : index
    %12 = vector.load %arg5[%11, %c0_7, %c0_8] : memref<8x8x128xf32, #tpu.memory_space<vmem>>, vector<1x8x128xf32>
    %13 = vector.shape_cast %12 : vector<1x8x128xf32> to vector<8x128xf32>
    %14 = vector.shape_cast %10 : vector<8x128xf32> to vector<1x8x128xf32>
    tpu.vector_store %arg5[%11, %c0_7, %c0_8], %14 {strides = array<i32>} : memref<8x8x128xf32, #tpu.memory_space<vmem>>, vector<1x8x128xf32>,
    %c1_i32 = arith.constant 1 : i32
    %15 = arith.index_cast %c1_i32 : i32 to index
    %c0_9 = arith.constant 0 : index
    %c0_10 = arith.constant 0 : index
    %16 = vector.load %arg2[%15, %c0_9, %c0_10] : memref<8x8x128xf32, #tpu.memory_space<vmem>>, vector<1x8x128xf32>
    %17 = vector.shape_cast %16 : vector<1x8x128xf32> to vector<8x128xf32>
    %c0_11 = arith.constant 0 : index
    %c0_12 = arith.constant 0 : index
    %18 = vector.load %arg4[%c0_11, %c0_12] : memref<128x128xf32, #tpu.memory_space<vmem>>, vector<128x128xf32>
    %cst_13 = arith.constant dense<0.000000e+00> : vector<8x128xf32>
    %19 = tpu.matmul %10, %18, %cst_13 {dimension_numbers = #tpu.dot_dimension_numbers<[1], [0], [0], [1], [0, 0, 1, 1], [], []>} : vector<8x128xf32>, vector<128x128xf32>, vector<8x128xf32> -> vector<8x128xf32>
    %20 = arith.addf %17, %19 : vector<8x128xf32>
    %21 = math.tanh %20 : vector<8x128xf32>
    %22 = arith.index_cast %c1_i32 : i32 to index
    %c0_14 = arith.constant 0 : index
    %c0_15 = arith.constant 0 : index
    %23 = vector.load %arg5[%22, %c0_14, %c0_15] : memref<8x8x128xf32, #tpu.memory_space<vmem>>, vector<1x8x128xf32>
    %24 = vector.shape_cast %23 : vector<1x8x128xf32> to vector<8x128xf32>
    %25 = vector.shape_cast %21 : vector<8x128xf32> to vector<1x8x128xf32>
    tpu.vector_store %arg5[%22, %c0_14, %c0_15], %25 {strides = array<i32>} : memref<8x8x128xf32, #tpu.memory_space<vmem>>, vector<1x8x128xf32>,
    %c2_i32 = arith.constant 2 : i32
    %26 = arith.index_cast %c2_i32 : i32 to index
    %c0_16 = arith.constant 0 : index
    %c0_17 = arith.constant 0 : index
    %27 = vector.load %arg2[%26, %c0_16, %c0_17] : memref<8x8x128xf32, #tpu.memory_space<vmem>>, vector<1x8x128xf32>
    %28 = vector.shape_cast %27 : vector<1x8x128xf32> to vector<8x128xf32>
    %c0_18 = arith.constant 0 : index
    %c0_19 = arith.constant 0 : index
    %29 = vector.load %arg4[%c0_18, %c0_19] : memref<128x128xf32, #tpu.memory_space<vmem>>, vector<128x128xf32>
    %cst_20 = arith.constant dense<0.000000e+00> : vector<8x128xf32>
    %30 = tpu.matmul %21, %29, %cst_20 {dimension_numbers = #tpu.dot_dimension_numbers<[1], [0], [0], [1], [0, 0, 1, 1], [], []>} : vector<8x128xf32>, vector<128x128xf32>, vector<8x128xf32> -> vector<8x128xf32>
    %31 = arith.addf %28, %30 : vector<8x128xf32>
    %32 = math.tanh %31 : vector<8x128xf32>
    %33 = arith.index_cast %c2_i32 : i32 to index
    %c0_21 = arith.constant 0 : index
    %c0_22 = arith.constant 0 : index
    %34 = vector.load %arg5[%33, %c0_21, %c0_22] : memref<8x8x128xf32, #tpu.memory_space<vmem>>, vector<1x8x128xf32>
    %35 = vector.shape_cast %34 : vector<1x8x128xf32> to vector<8x128xf32>
    %36 = vector.shape_cast %32 : vector<8x128xf32> to vector<1x8x128xf32>
    tpu.vector_store %arg5[%33, %c0_21, %c0_22], %36 {strides = array<i32>} : memref<8x8x128xf32, #tpu.memory_space<vmem>>, vector<1x8x128xf32>,
    %c3_i32 = arith.constant 3 : i32
    %37 = arith.index_cast %c3_i32 : i32 to index
    %c0_23 = arith.constant 0 : index
    %c0_24 = arith.constant 0 : index
    %38 = vector.load %arg2[%37, %c0_23, %c0_24] : memref<8x8x128xf32, #tpu.memory_space<vmem>>, vector<1x8x128xf32>
    %39 = vector.shape_cast %38 : vector<1x8x128xf32> to vector<8x128xf32>
    %c0_25 = arith.constant 0 : index
    %c0_26 = arith.constant 0 : index
    %40 = vector.load %arg4[%c0_25, %c0_26] : memref<128x128xf32, #tpu.memory_space<vmem>>, vector<128x128xf32>
    %cst_27 = arith.constant dense<0.000000e+00> : vector<8x128xf32>
    %41 = tpu.matmul %32, %40, %cst_27 {dimension_numbers = #tpu.dot_dimension_numbers<[1], [0], [0], [1], [0, 0, 1, 1], [], []>} : vector<8x128xf32>, vector<128x128xf32>, vector<8x128xf32> -> vector<8x128xf32>
    %42 = arith.addf %39, %41 : vector<8x128xf32>
    %43 = math.tanh %42 : vector<8x128xf32>
    %44 = arith.index_cast %c3_i32 : i32 to index
    %c0_28 = arith.constant 0 : index
    %c0_29 = arith.constant 0 : index
    %45 = vector.load %arg5[%44, %c0_28, %c0_29] : memref<8x8x128xf32, #tpu.memory_space<vmem>>, vector<1x8x128xf32>
    %46 = vector.shape_cast %45 : vector<1x8x128xf32> to vector<8x128xf32>
    %47 = vector.shape_cast %43 : vector<8x128xf32> to vector<1x8x128xf32>
    tpu.vector_store %arg5[%44, %c0_28, %c0_29], %47 {strides = array<i32>} : memref<8x8x128xf32, #tpu.memory_space<vmem>>, vector<1x8x128xf32>,
    %c4_i32 = arith.constant 4 : i32
    %48 = arith.index_cast %c4_i32 : i32 to index
    %c0_30 = arith.constant 0 : index
    %c0_31 = arith.constant 0 : index
    %49 = vector.load %arg2[%48, %c0_30, %c0_31] : memref<8x8x128xf32, #tpu.memory_space<vmem>>, vector<1x8x128xf32>
    %50 = vector.shape_cast %49 : vector<1x8x128xf32> to vector<8x128xf32>
    %c0_32 = arith.constant 0 : index
    %c0_33 = arith.constant 0 : index
    %51 = vector.load %arg4[%c0_32, %c0_33] : memref<128x128xf32, #tpu.memory_space<vmem>>, vector<128x128xf32>
    %cst_34 = arith.constant dense<0.000000e+00> : vector<8x128xf32>
    %52 = tpu.matmul %43, %51, %cst_34 {dimension_numbers = #tpu.dot_dimension_numbers<[1], [0], [0], [1], [0, 0, 1, 1], [], []>} : vector<8x128xf32>, vector<128x128xf32>, vector<8x128xf32> -> vector<8x128xf32>
    %53 = arith.addf %50, %52 : vector<8x128xf32>
    %54 = math.tanh %53 : vector<8x128xf32>
    %55 = arith.index_cast %c4_i32 : i32 to index
    %c0_35 = arith.constant 0 : index
    %c0_36 = arith.constant 0 : index
    %56 = vector.load %arg5[%55, %c0_35, %c0_36] : memref<8x8x128xf32, #tpu.memory_space<vmem>>, vector<1x8x128xf32>
    %57 = vector.shape_cast %56 : vector<1x8x128xf32> to vector<8x128xf32>
    %58 = vector.shape_cast %54 : vector<8x128xf32> to vector<1x8x128xf32>
    tpu.vector_store %arg5[%55, %c0_35, %c0_36], %58 {strides = array<i32>} : memref<8x8x128xf32, #tpu.memory_space<vmem>>, vector<1x8x128xf32>,
    %c5_i32 = arith.constant 5 : i32
    %59 = arith.index_cast %c5_i32 : i32 to index
    %c0_37 = arith.constant 0 : index
    %c0_38 = arith.constant 0 : index
    %60 = vector.load %arg2[%59, %c0_37, %c0_38] : memref<8x8x128xf32, #tpu.memory_space<vmem>>, vector<1x8x128xf32>
    %61 = vector.shape_cast %60 : vector<1x8x128xf32> to vector<8x128xf32>
    %c0_39 = arith.constant 0 : index
    %c0_40 = arith.constant 0 : index
    %62 = vector.load %arg4[%c0_39, %c0_40] : memref<128x128xf32, #tpu.memory_space<vmem>>, vector<128x128xf32>
    %cst_41 = arith.constant dense<0.000000e+00> : vector<8x128xf32>
    %63 = tpu.matmul %54, %62, %cst_41 {dimension_numbers = #tpu.dot_dimension_numbers<[1], [0], [0], [1], [0, 0, 1, 1], [], []>} : vector<8x128xf32>, vector<128x128xf32>, vector<8x128xf32> -> vector<8x128xf32>
    %64 = arith.addf %61, %63 : vector<8x128xf32>
    %65 = math.tanh %64 : vector<8x128xf32>
    %66 = arith.index_cast %c5_i32 : i32 to index
    %c0_42 = arith.constant 0 : index
    %c0_43 = arith.constant 0 : index
    %67 = vector.load %arg5[%66, %c0_42, %c0_43] : memref<8x8x128xf32, #tpu.memory_space<vmem>>, vector<1x8x128xf32>
    %68 = vector.shape_cast %67 : vector<1x8x128xf32> to vector<8x128xf32>
    %69 = vector.shape_cast %65 : vector<8x128xf32> to vector<1x8x128xf32>
    tpu.vector_store %arg5[%66, %c0_42, %c0_43], %69 {strides = array<i32>} : memref<8x8x128xf32, #tpu.memory_space<vmem>>, vector<1x8x128xf32>,
    %c6_i32 = arith.constant 6 : i32
    %70 = arith.index_cast %c6_i32 : i32 to index
    %c0_44 = arith.constant 0 : index
    %c0_45 = arith.constant 0 : index
    %71 = vector.load %arg2[%70, %c0_44, %c0_45] : memref<8x8x128xf32, #tpu.memory_space<vmem>>, vector<1x8x128xf32>
    %72 = vector.shape_cast %71 : vector<1x8x128xf32> to vector<8x128xf32>
    %c0_46 = arith.constant 0 : index
    %c0_47 = arith.constant 0 : index
    %73 = vector.load %arg4[%c0_46, %c0_47] : memref<128x128xf32, #tpu.memory_space<vmem>>, vector<128x128xf32>
    %cst_48 = arith.constant dense<0.000000e+00> : vector<8x128xf32>
    %74 = tpu.matmul %65, %73, %cst_48 {dimension_numbers = #tpu.dot_dimension_numbers<[1], [0], [0], [1], [0, 0, 1, 1], [], []>} : vector<8x128xf32>, vector<128x128xf32>, vector<8x128xf32> -> vector<8x128xf32>
    %75 = arith.addf %72, %74 : vector<8x128xf32>
    %76 = math.tanh %75 : vector<8x128xf32>
    %77 = arith.index_cast %c6_i32 : i32 to index
    %c0_49 = arith.constant 0 : index
    %c0_50 = arith.constant 0 : index
    %78 = vector.load %arg5[%77, %c0_49, %c0_50] : memref<8x8x128xf32, #tpu.memory_space<vmem>>, vector<1x8x128xf32>
    %79 = vector.shape_cast %78 : vector<1x8x128xf32> to vector<8x128xf32>
    %80 = vector.shape_cast %76 : vector<8x128xf32> to vector<1x8x128xf32>
    tpu.vector_store %arg5[%77, %c0_49, %c0_50], %80 {strides = array<i32>} : memref<8x8x128xf32, #tpu.memory_space<vmem>>, vector<1x8x128xf32>,
    %c7_i32 = arith.constant 7 : i32
    %81 = arith.index_cast %c7_i32 : i32 to index
    %c0_51 = arith.constant 0 : index
    %c0_52 = arith.constant 0 : index
    %82 = vector.load %arg2[%81, %c0_51, %c0_52] : memref<8x8x128xf32, #tpu.memory_space<vmem>>, vector<1x8x128xf32>
    %83 = vector.shape_cast %82 : vector<1x8x128xf32> to vector<8x128xf32>
    %c0_53 = arith.constant 0 : index
    %c0_54 = arith.constant 0 : index
    %84 = vector.load %arg4[%c0_53, %c0_54] : memref<128x128xf32, #tpu.memory_space<vmem>>, vector<128x128xf32>
    %cst_55 = arith.constant dense<0.000000e+00> : vector<8x128xf32>
    %85 = tpu.matmul %76, %84, %cst_55 {dimension_numbers = #tpu.dot_dimension_numbers<[1], [0], [0], [1], [0, 0, 1, 1], [], []>} : vector<8x128xf32>, vector<128x128xf32>, vector<8x128xf32> -> vector<8x128xf32>
    %86 = arith.addf %83, %85 : vector<8x128xf32>
    %87 = math.tanh %86 : vector<8x128xf32>
    %88 = arith.index_cast %c7_i32 : i32 to index
    %c0_56 = arith.constant 0 : index
    %c0_57 = arith.constant 0 : index
    %89 = vector.load %arg5[%88, %c0_56, %c0_57] : memref<8x8x128xf32, #tpu.memory_space<vmem>>, vector<1x8x128xf32>
    %90 = vector.shape_cast %89 : vector<1x8x128xf32> to vector<8x128xf32>
    %91 = vector.shape_cast %87 : vector<8x128xf32> to vector<1x8x128xf32>
    tpu.vector_store %arg5[%88, %c0_56, %c0_57], %91 {strides = array<i32>} : memref<8x8x128xf32, #tpu.memory_space<vmem>>, vector<1x8x128xf32>,
    %c8_i32 = arith.constant 8 : i32
    %c0_58 = arith.constant 0 : index
    %c0_59 = arith.constant 0 : index
    %92 = vector.load %arg6[%c0_58, %c0_59] : memref<8x128xf32, #tpu.memory_space<vmem>>, vector<8x128xf32>
    tpu.vector_store %arg6[%c0_58, %c0_59], %87 {strides = array<i32>} : memref<8x128xf32, #tpu.memory_space<vmem>>, vector<8x128xf32>,
    return
  }
  func.func @transform_0(%arg0: i32, %arg1: i32) -> (i32, i32, i32) {
    %c0_i32 = arith.constant 0 : i32
    %c0_i32_0 = arith.constant 0 : i32
    return %arg1, %arg0, %c0_i32 : i32, i32, i32
  }
  func.func @transform_1(%arg0: i32, %arg1: i32) -> (i32, i32) {
    %c0_i32 = arith.constant 0 : i32
    %c0_i32_0 = arith.constant 0 : i32
    return %arg0, %c0_i32 : i32, i32
  }
  func.func @transform_2(%arg0: i32, %arg1: i32) -> (i32, i32) {
    %c0_i32 = arith.constant 0 : i32
    %c0_i32_0 = arith.constant 0 : i32
    %c0_i32_1 = arith.constant 0 : i32
    return %c0_i32, %c0_i32_0 : i32, i32
  }
  func.func @transform_3(%arg0: i32, %arg1: i32) -> (i32, i32, i32) {
    %c0_i32 = arith.constant 0 : i32
    %c0_i32_0 = arith.constant 0 : i32
    return %arg1, %arg0, %c0_i32 : i32, i32, i32
  }
}

</mosaic_0001>

<llo_original>
// kernel: tpu_custom_call.1
$region0: #{tpu_custom_call.1}
  #allocation0 [shape = 'u32[]', space=smem, size = 0x4, offset = 0x4, fixed_abs, tag = 'smem constant byte address 0x4 - core index']
  #allocation1 [shape = 'u32[72,128]{1,0:T(1,128)}', space=vmem, size = 0x9000, scoped, tag = 'internal scratch']
  #allocation2 [shape = 'f32[8,128]{1,0:T(8,128)}', space=vmem, size = 0x1000, scoped, tag = 'scratch operand']
  %s0 = inlined_call_operand.hbm [shape: f32[8,8,128], index: 0, kind: input, shape index: {}]
  %s1 = inlined_call_operand.hbm [shape: f32[8,128], index: 1, kind: input, shape index: {}]
  %s2 = inlined_call_operand.hbm [shape: f32[128,128], index: 2, kind: input, shape index: {}]
  %s3 = inlined_call_operand.hbm [shape: f32[8,8,128], index: 3, kind: output, shape index: {}]
  %s4 = sld [smem:[#allocation0]]
  $region38: #{tpu_custom_call.1} parent=0
    _
  %s6 = ssub.s32 1, %s4
  %s7 = scalar_select 0, %s6, %s4
  $region1: #{tpu_custom_call.1} parent=0
    #allocation3 [shape = 'u8[32768]{0}', space=vmem, size = 0x8000, scoped, tag = 'input window, operand 0, single buffered']
    #allocation4 [shape = 's32[1]{0}', space=sflag, size = 0x4, scoped, tag = 'scoped memory for tpu_custom_call.1']
    #allocation5 [shape = 's32[1]{0}', space=sflag, size = 0x4, scoped, tag = 'scoped memory for tpu_custom_call.1']
    #allocation6 [shape = 'u8[4096]{0}', space=vmem, size = 0x1000, scoped, tag = 'input window, operand 1, single buffered']
    #allocation7 [shape = 's32[1]{0}', space=sflag, size = 0x4, scoped, tag = 'scoped memory for tpu_custom_call.1']
    #allocation8 [shape = 'u8[65536]{0}', space=vmem, size = 0x10000, scoped, tag = 'input window, operand 2, single buffered']
    #allocation9 [shape = 'u8[32768]{0}', space=vmem, size = 0x8000, scoped, tag = 'output window, operand 0, single buffered']
    %8 = vsyncpa [#allocation4], 0
    %9 = vsyncpa [#allocation7], 0
    %10 = vsyncpa [#allocation5], 0
    // Predicated region
    $region2: #{tpu_custom_call.1} parent=1 // pred_check
      _
    $region3: #{tpu_custom_call.1} parent=1 // pred_check_branch
      %12 = sbr.rel (0) target = $region5
    $region4: #{tpu_custom_call.1} parent=1 // pred_region
      %14 = vsyncadd [#allocation4], 0
      %s15 = sshll.u32 %s0, 4
      %s16 = int_to_ptr.hbm [resolvable:$true] %s15
      %s17 = sshll.u32 [#allocation3], 4
      %s18 = int_to_ptr.vmem [resolvable:$true] %s17
      %23 = dma.hbm_to_vmem [thread:$0]  %s16, 1024, %s18, [#allocation4], 128, 128, 8
    $region5: #{tpu_custom_call.1} parent=1 // pred_fallthru
      _
    // Predicated region
    $region6: #{tpu_custom_call.1} parent=1 // pred_check
      _
    $region7: #{tpu_custom_call.1} parent=1 // pred_check_branch
      %25 = sbr.rel (0) target = $region9
    $region8: #{tpu_custom_call.1} parent=1 // pred_region
      %27 = vsyncadd [#allocation7], 0
      %s29 = sshll.u32 %s1, 4
      %s30 = int_to_ptr.hbm [resolvable:$true] %s29
      %s31 = sshll.u32 [#allocation6], 4
      %s32 = int_to_ptr.vmem [resolvable:$true] %s31
      %34 = dma.hbm_to_vmem [thread:$0]  %s30, 128, %s32, [#allocation7]
    $region9: #{tpu_custom_call.1} parent=1 // pred_fallthru
      _
    // Predicated region
    $region10: #{tpu_custom_call.1} parent=1 // pred_check
      _
    $region11: #{tpu_custom_call.1} parent=1 // pred_check_branch
      %36 = sbr.rel (0) target = $region13
    $region12: #{tpu_custom_call.1} parent=1 // pred_region
      %38 = vsyncadd [#allocation7], 0
      %s39 = sshll.u32 %s2, 4
      %s40 = int_to_ptr.hbm [resolvable:$true] %s39
      %s41 = sshll.u32 [#allocation8], 4
      %s42 = int_to_ptr.vmem [resolvable:$true] %s41
      %47 = dma.hbm_to_vmem [thread:$0]  %s40, 2048, %s42, [#allocation7], 128, 128, 8
    $region13: #{tpu_custom_call.1} parent=1 // pred_fallthru
      _
    // Predicated region
    $region14: #{tpu_custom_call.1} parent=1 // pred_check
      _
    $region15: #{tpu_custom_call.1} parent=1 // pred_check_branch
      %49 = sbr.rel (0) target = $region17
    $region16: #{tpu_custom_call.1} parent=1 // pred_region
      %51 = dma.done [#allocation4], 1024
    $region17: #{tpu_custom_call.1} parent=1 // pred_fallthru
      _
    // Predicated region
    $region18: #{tpu_custom_call.1} parent=1 // pred_check
      _
    $region19: #{tpu_custom_call.1} parent=1 // pred_check_branch
      %53 = sbr.rel (0) target = $region21
    $region20: #{tpu_custom_call.1} parent=1 // pred_region
      %55 = dma.done [#allocation7], 128
    $region21: #{tpu_custom_call.1} parent=1 // pred_fallthru
      _
    // Predicated region
    $region22: #{tpu_custom_call.1} parent=1 // pred_check
      _
    $region23: #{tpu_custom_call.1} parent=1 // pred_check_branch
      %57 = sbr.rel (0) target = $region25
    $region24: #{tpu_custom_call.1} parent=1 // pred_region
      %59 = dma.done [#allocation7], 2048
    $region25: #{tpu_custom_call.1} parent=1 // pred_fallthru
      _
    %p60 = scmp.eq.s32.totalorder 0, 0
    // Predicated region
    $region26: #{tpu_custom_call.1} parent=1 // pred_check
      %p61 = pneg %p60
    $region27: #{tpu_custom_call.1} parent=1 // pred_check_branch
      %63 = sbr.rel (%p61) target = $region29
    $region28: #{tpu_custom_call.1} parent=1 // pred_region
      %v64 = vld [vmem:[#allocation6] sm:$0xff]
      %65 = vst [vmem:[#allocation2] sm:$0xff] %v64
    $region29: #{tpu_custom_call.1} parent=1 // pred_fallthru
      _
    %v66 = vld [vmem:[#allocation2] sm:$0xff]
    %v67 = vld [vmem:[#allocation3] sm:$0xff]
    %v68 = vld [vmem:[#allocation8] sm:$0xff]
    %v69 = vld [vmem:[#allocation8 + $0x8] sm:$0xff]
    %v70 = vld [vmem:[#allocation8 + $0x10] sm:$0xff]
    %v71 = vld [vmem:[#allocation8 + $0x18] sm:$0xff]
    %v72 = vld [vmem:[#allocation8 + $0x20] sm:$0xff]
    %v73 = vld [vmem:[#allocation8 + $0x28] sm:$0xff]
    %v74 = vld [vmem:[#allocation8 + $0x30] sm:$0xff]
    %v75 = vld [vmem:[#allocation8 + $0x38] sm:$0xff]
    %v76 = vld [vmem:[#allocation8 + $0x40] sm:$0xff]
    %v77 = vld [vmem:[#allocation8 + $0x48] sm:$0xff]
    %v78 = vld [vmem:[#allocation8 + $0x50] sm:$0xff]
    %v79 = vld [vmem:[#allocation8 + $0x58] sm:$0xff]
    %v80 = vld [vmem:[#allocation8 + $0x60] sm:$0xff]
    %v81 = vld [vmem:[#allocation8 + $0x68] sm:$0xff]
    %v82 = vld [vmem:[#allocation8 + $0x70] sm:$0xff]
    %v83 = vld [vmem:[#allocation8 + $0x78] sm:$0xff]
    %84 = vmatpush.msra.mxu0 %v83
    %85 = vmatpush.msra.mxu0 %v82
    %86 = vmatpush.msra.mxu0 %v81
    %87 = vmatpush.msra.mxu0 %v80
    %88 = vmatpush.msra.mxu0 %v79
    %89 = vmatpush.msra.mxu0 %v78
    %90 = vmatpush.msra.mxu0 %v77
    %91 = vmatpush.msra.mxu0 %v76
    %92 = vmatpush.msra.mxu0 %v75
    %93 = vmatpush.msra.mxu0 %v74
    %94 = vmatpush.msra.mxu0 %v73
    %95 = vmatpush.msra.mxu0 %v72
    %96 = vmatpush.msra.mxu0 %v71
    %97 = vmatpush.msra.mxu0 %v70
    %98 = vmatpush.msra.mxu0 %v69
    %99 = vmatpush.msra.mxu0 %v68
    %100 = vmatmul.f32.gmra.mxu0 %v66
    %v101 = vpop.f32.mrf.mxu0
    %v102 = vadd.f32 0.0, %v101
    %103 = vdwg.mxu0
    %v104 = vadd.f32 %v67, %v102
    %v105 = vtanh.pop %v104
    %106 = vst [vmem:[#allocation9] sm:$0xff] %v105
    %s107 = scalar_lea.vmem [#allocation3], 8
    %v108 = vld [vmem:[%s107] sm:$0xff]
    %v109 = vld [vmem:[#allocation8] sm:$0xff]
    %v110 = vld [vmem:[#allocation8 + $0x8] sm:$0xff]
    %v111 = vld [vmem:[#allocation8 + $0x10] sm:$0xff]
    %v112 = vld [vmem:[#allocation8 + $0x18] sm:$0xff]
    %v113 = vld [vmem:[#allocation8 + $0x20] sm:$0xff]
    %v114 = vld [vmem:[#allocation8 + $0x28] sm:$0xff]
    %v115 = vld [vmem:[#allocation8 + $0x30] sm:$0xff]
    %v116 = vld [vmem:[#allocation8 + $0x38] sm:$0xff]
    %v117 = vld [vmem:[#allocation8 + $0x40] sm:$0xff]
    %v118 = vld [vmem:[#allocation8 + $0x48] sm:$0xff]
    %v119 = vld [vmem:[#allocation8 + $0x50] sm:$0xff]
    %v120 = vld [vmem:[#allocation8 + $0x58] sm:$0xff]
    %v121 = vld [vmem:[#allocation8 + $0x60] sm:$0xff]
    %v122 = vld [vmem:[#allocation8 + $0x68] sm:$0xff]
    %v123 = vld [vmem:[#allocation8 + $0x70] sm:$0xff]
    %v124 = vld [vmem:[#allocation8 + $0x78] sm:$0xff]
    %125 = vmatpush.msra.mxu0 %v124
    %126 = vmatpush.msra.mxu0 %v123
    %127 = vmatpush.msra.mxu0 %v122
    %128 = vmatpush.msra.mxu0 %v121
    %129 = vmatpush.msra.mxu0 %v120
    %130 = vmatpush.msra.mxu0 %v119
    %131 = vmatpush.msra.mxu0 %v118
    %132 = vmatpush.msra.mxu0 %v117
    %133 = vmatpush.msra.mxu0 %v116
    %134 = vmatpush.msra.mxu0 %v115
    %135 = vmatpush.msra.mxu0 %v114
    %136 = vmatpush.msra.mxu0 %v113
    %137 = vmatpush.msra.mxu0 %v112
    %138 = vmatpush.msra.mxu0 %v111
    %139 = vmatpush.msra.mxu0 %v110
    %140 = vmatpush.msra.mxu0 %v109
    %141 = vmatmul.f32.gmra.mxu0 %v105
    %v142 = vpop.f32.mrf.mxu0
    %v143 = vadd.f32 0.0, %v142
    %144 = vdwg.mxu0
    %v145 = vadd.f32 %v108, %v143
    %v146 = vtanh.pop %v145
    %s147 = scalar_lea.vmem [#allocation9], 8
    %148 = vst [vmem:[%s147] sm:$0xff] %v146
    %s149 = scalar_lea.vmem [#allocation3], 16
    %v150 = vld [vmem:[%s149] sm:$0xff]
    %v151 = vld [vmem:[#allocation8] sm:$0xff]
    %v152 = vld [vmem:[#allocation8 + $0x8] sm:$0xff]
    %v153 = vld [vmem:[#allocation8 + $0x10] sm:$0xff]
    %v154 = vld [vmem:[#allocation8 + $0x18] sm:$0xff]
    %v155 = vld [vmem:[#allocation8 + $0x20] sm:$0xff]
    %v156 = vld [vmem:[#allocation8 + $0x28] sm:$0xff]
    %v157 = vld [vmem:[#allocation8 + $0x30] sm:$0xff]
    %v158 = vld [vmem:[#allocation8 + $0x38] sm:$0xff]
    %v159 = vld [vmem:[#allocation8 + $0x40] sm:$0xff]
    %v160 = vld [vmem:[#allocation8 + $0x48] sm:$0xff]
    %v161 = vld [vmem:[#allocation8 + $0x50] sm:$0xff]
    %v162 = vld [vmem:[#allocation8 + $0x58] sm:$0xff]
    %v163 = vld [vmem:[#allocation8 + $0x60] sm:$0xff]
    %v164 = vld [vmem:[#allocation8 + $0x68] sm:$0xff]
    %v165 = vld [vmem:[#allocation8 + $0x70] sm:$0xff]
    %v166 = vld [vmem:[#allocation8 + $0x78] sm:$0xff]
    %167 = vmatpush.msra.mxu0 %v166
    %168 = vmatpush.msra.mxu0 %v165
    %169 = vmatpush.msra.mxu0 %v164
    %170 = vmatpush.msra.mxu0 %v163
    %171 = vmatpush.msra.mxu0 %v162
    %172 = vmatpush.msra.mxu0 %v161
    %173 = vmatpush.msra.mxu0 %v160
    %174 = vmatpush.msra.mxu0 %v159
    %175 = vmatpush.msra.mxu0 %v158
    %176 = vmatpush.msra.mxu0 %v157
    %177 = vmatpush.msra.mxu0 %v156
    %178 = vmatpush.msra.mxu0 %v155
    %179 = vmatpush.msra.mxu0 %v154
    %180 = vmatpush.msra.mxu0 %v153
    %181 = vmatpush.msra.mxu0 %v152
    %182 = vmatpush.msra.mxu0 %v151
    %183 = vmatmul.f32.gmra.mxu0 %v146
    %v184 = vpop.f32.mrf.mxu0
    %v185 = vadd.f32 0.0, %v184
    %186 = vdwg.mxu0
    %v187 = vadd.f32 %v150, %v185
    %v188 = vtanh.pop %v187
    %s189 = scalar_lea.vmem [#allocation9], 16
    %190 = vst [vmem:[%s189] sm:$0xff] %v188
    %s191 = scalar_lea.vmem [#allocation3], 24
    %v192 = vld [vmem:[%s191] sm:$0xff]
    %v193 = vld [vmem:[#allocation8] sm:$0xff]
    %v194 = vld [vmem:[#allocation8 + $0x8] sm:$0xff]
    %v195 = vld [vmem:[#allocation8 + $0x10] sm:$0xff]
    %v196 = vld [vmem:[#allocation8 + $0x18] sm:$0xff]
    %v197 = vld [vmem:[#allocation8 + $0x20] sm:$0xff]
    %v198 = vld [vmem:[#allocation8 + $0x28] sm:$0xff]
    %v199 = vld [vmem:[#allocation8 + $0x30] sm:$0xff]
    %v200 = vld [vmem:[#allocation8 + $0x38] sm:$0xff]
    %v201 = vld [vmem:[#allocation8 + $0x40] sm:$0xff]
    %v202 = vld [vmem:[#allocation8 + $0x48] sm:$0xff]
    %v203 = vld [vmem:[#allocation8 + $0x50] sm:$0xff]
    %v204 = vld [vmem:[#allocation8 + $0x58] sm:$0xff]
    %v205 = vld [vmem:[#allocation8 + $0x60] sm:$0xff]
    %v206 = vld [vmem:[#allocation8 + $0x68] sm:$0xff]
    %v207 = vld [vmem:[#allocation8 + $0x70] sm:$0xff]
    %v208 = vld [vmem:[#allocation8 + $0x78] sm:$0xff]
    %209 = vmatpush.msra.mxu0 %v208
    %210 = vmatpush.msra.mxu0 %v207
    %211 = vmatpush.msra.mxu0 %v206
    %212 = vmatpush.msra.mxu0 %v205
    %213 = vmatpush.msra.mxu0 %v204
    %214 = vmatpush.msra.mxu0 %v203
    %215 = vmatpush.msra.mxu0 %v202
    %216 = vmatpush.msra.mxu0 %v201
    %217 = vmatpush.msra.mxu0 %v200
    %218 = vmatpush.msra.mxu0 %v199
    %219 = vmatpush.msra.mxu0 %v198
    %220 = vmatpush.msra.mxu0 %v197
    %221 = vmatpush.msra.mxu0 %v196
    %222 = vmatpush.msra.mxu0 %v195
    %223 = vmatpush.msra.mxu0 %v194
    %224 = vmatpush.msra.mxu0 %v193
    %225 = vmatmul.f32.gmra.mxu0 %v188
    %v226 = vpop.f32.mrf.mxu0
    %v227 = vadd.f32 0.0, %v226
    %228 = vdwg.mxu0
    %v229 = vadd.f32 %v192, %v227
    %v230 = vtanh.pop %v229
    %s231 = scalar_lea.vmem [#allocation9], 24
    %232 = vst [vmem:[%s231] sm:$0xff] %v230
    %s233 = scalar_lea.vmem [#allocation3], 32
    %v234 = vld [vmem:[%s233] sm:$0xff]
    %v235 = vld [vmem:[#allocation8] sm:$0xff]
    %v236 = vld [vmem:[#allocation8 + $0x8] sm:$0xff]
    %v237 = vld [vmem:[#allocation8 + $0x10] sm:$0xff]
    %v238 = vld [vmem:[#allocation8 + $0x18] sm:$0xff]
    %v239 = vld [vmem:[#allocation8 + $0x20] sm:$0xff]
    %v240 = vld [vmem:[#allocation8 + $0x28] sm:$0xff]
    %v241 = vld [vmem:[#allocation8 + $0x30] sm:$0xff]
    %v242 = vld [vmem:[#allocation8 + $0x38] sm:$0xff]
    %v243 = vld [vmem:[#allocation8 + $0x40] sm:$0xff]
    %v244 = vld [vmem:[#allocation8 + $0x48] sm:$0xff]
    %v245 = vld [vmem:[#allocation8 + $0x50] sm:$0xff]
    %v246 = vld [vmem:[#allocation8 + $0x58] sm:$0xff]
    %v247 = vld [vmem:[#allocation8 + $0x60] sm:$0xff]
    %v248 = vld [vmem:[#allocation8 + $0x68] sm:$0xff]
    %v249 = vld [vmem:[#allocation8 + $0x70] sm:$0xff]
    %v250 = vld [vmem:[#allocation8 + $0x78] sm:$0xff]
    %251 = vmatpush.msra.mxu0 %v250
    %252 = vmatpush.msra.mxu0 %v249
    %253 = vmatpush.msra.mxu0 %v248
    %254 = vmatpush.msra.mxu0 %v247
    %255 = vmatpush.msra.mxu0 %v246
    %256 = vmatpush.msra.mxu0 %v245
    %257 = vmatpush.msra.mxu0 %v244
    %258 = vmatpush.msra.mxu0 %v243
    %259 = vmatpush.msra.mxu0 %v242
    %260 = vmatpush.msra.mxu0 %v241
    %261 = vmatpush.msra.mxu0 %v240
    %262 = vmatpush.msra.mxu0 %v239
    %263 = vmatpush.msra.mxu0 %v238
    %264 = vmatpush.msra.mxu0 %v237
    %265 = vmatpush.msra.mxu0 %v236
    %266 = vmatpush.msra.mxu0 %v235
    %267 = vmatmul.f32.gmra.mxu0 %v230
    %v268 = vpop.f32.mrf.mxu0
    %v269 = vadd.f32 0.0, %v268
    %270 = vdwg.mxu0
    %v271 = vadd.f32 %v234, %v269
    %v272 = vtanh.pop %v271
    %s273 = scalar_lea.vmem [#allocation9], 32
    %274 = vst [vmem:[%s273] sm:$0xff] %v272
    %s275 = scalar_lea.vmem [#allocation3], 40
    %v276 = vld [vmem:[%s275] sm:$0xff]
    %v277 = vld [vmem:[#allocation8] sm:$0xff]
    %v278 = vld [vmem:[#allocation8 + $0x8] sm:$0xff]
    %v279 = vld [vmem:[#allocation8 + $0x10] sm:$0xff]
    %v280 = vld [vmem:[#allocation8 + $0x18] sm:$0xff]
    %v281 = vld [vmem:[#allocation8 + $0x20] sm:$0xff]
    %v282 = vld [vmem:[#allocation8 + $0x28] sm:$0xff]
    %v283 = vld [vmem:[#allocation8 + $0x30] sm:$0xff]
    %v284 = vld [vmem:[#allocation8 + $0x38] sm:$0xff]
    %v285 = vld [vmem:[#allocation8 + $0x40] sm:$0xff]
    %v286 = vld [vmem:[#allocation8 + $0x48] sm:$0xff]
    %v287 = vld [vmem:[#allocation8 + $0x50] sm:$0xff]
    %v288 = vld [vmem:[#allocation8 + $0x58] sm:$0xff]
    %v289 = vld [vmem:[#allocation8 + $0x60] sm:$0xff]
    %v290 = vld [vmem:[#allocation8 + $0x68] sm:$0xff]
    %v291 = vld [vmem:[#allocation8 + $0x70] sm:$0xff]
    %v292 = vld [vmem:[#allocation8 + $0x78] sm:$0xff]
    %293 = vmatpush.msra.mxu0 %v292
    %294 = vmatpush.msra.mxu0 %v291
    %295 = vmatpush.msra.mxu0 %v290
    %296 = vmatpush.msra.mxu0 %v289
    %297 = vmatpush.msra.mxu0 %v288
    %298 = vmatpush.msra.mxu0 %v287
    %299 = vmatpush.msra.mxu0 %v286
    %300 = vmatpush.msra.mxu0 %v285
    %301 = vmatpush.msra.mxu0 %v284
    %302 = vmatpush.msra.mxu0 %v283
    %303 = vmatpush.msra.mxu0 %v282
    %304 = vmatpush.msra.mxu0 %v281
    %305 = vmatpush.msra.mxu0 %v280
    %306 = vmatpush.msra.mxu0 %v279
    %307 = vmatpush.msra.mxu0 %v278
    %308 = vmatpush.msra.mxu0 %v277
    %309 = vmatmul.f32.gmra.mxu0 %v272
    %v310 = vpop.f32.mrf.mxu0
    %v311 = vadd.f32 0.0, %v310
    %312 = vdwg.mxu0
    %v313 = vadd.f32 %v276, %v311
    %v314 = vtanh.pop %v313
    %s315 = scalar_lea.vmem [#allocation9], 40
    %316 = vst [vmem:[%s315] sm:$0xff] %v314
    %s317 = scalar_lea.vmem [#allocation3], 48
    %v318 = vld [vmem:[%s317] sm:$0xff]
    %v319 = vld [vmem:[#allocation8] sm:$0xff]
    %v320 = vld [vmem:[#allocation8 + $0x8] sm:$0xff]
    %v321 = vld [vmem:[#allocation8 + $0x10] sm:$0xff]
    %v322 = vld [vmem:[#allocation8 + $0x18] sm:$0xff]
    %v323 = vld [vmem:[#allocation8 + $0x20] sm:$0xff]
    %v324 = vld [vmem:[#allocation8 + $0x28] sm:$0xff]
    %v325 = vld [vmem:[#allocation8 + $0x30] sm:$0xff]
    %v326 = vld [vmem:[#allocation8 + $0x38] sm:$0xff]
    %v327 = vld [vmem:[#allocation8 + $0x40] sm:$0xff]
    %v328 = vld [vmem:[#allocation8 + $0x48] sm:$0xff]
    %v329 = vld [vmem:[#allocation8 + $0x50] sm:$0xff]
    %v330 = vld [vmem:[#allocation8 + $0x58] sm:$0xff]
    %v331 = vld [vmem:[#allocation8 + $0x60] sm:$0xff]
    %v332 = vld [vmem:[#allocation8 + $0x68] sm:$0xff]
    %v333 = vld [vmem:[#allocation8 + $0x70] sm:$0xff]
    %v334 = vld [vmem:[#allocation8 + $0x78] sm:$0xff]
    %335 = vmatpush.msra.mxu0 %v334
    %336 = vmatpush.msra.mxu0 %v333
    %337 = vmatpush.msra.mxu0 %v332
    %338 = vmatpush.msra.mxu0 %v331
    %339 = vmatpush.msra.mxu0 %v330
    %340 = vmatpush.msra.mxu0 %v329
    %341 = vmatpush.msra.mxu0 %v328
    %342 = vmatpush.msra.mxu0 %v327
    %343 = vmatpush.msra.mxu0 %v326
    %344 = vmatpush.msra.mxu0 %v325
    %345 = vmatpush.msra.mxu0 %v324
    %346 = vmatpush.msra.mxu0 %v323
    %347 = vmatpush.msra.mxu0 %v322
    %348 = vmatpush.msra.mxu0 %v321
    %349 = vmatpush.msra.mxu0 %v320
    %350 = vmatpush.msra.mxu0 %v319
    %351 = vmatmul.f32.gmra.mxu0 %v314
    %v352 = vpop.f32.mrf.mxu0
    %v353 = vadd.f32 0.0, %v352
    %354 = vdwg.mxu0
    %v355 = vadd.f32 %v318, %v353
    %v356 = vtanh.pop %v355
    %s357 = scalar_lea.vmem [#allocation9], 48
    %358 = vst [vmem:[%s357] sm:$0xff] %v356
    %s359 = scalar_lea.vmem [#allocation3], 56
    %v360 = vld [vmem:[%s359] sm:$0xff]
    %v361 = vld [vmem:[#allocation8] sm:$0xff]
    %v362 = vld [vmem:[#allocation8 + $0x8] sm:$0xff]
    %v363 = vld [vmem:[#allocation8 + $0x10] sm:$0xff]
    %v364 = vld [vmem:[#allocation8 + $0x18] sm:$0xff]
    %v365 = vld [vmem:[#allocation8 + $0x20] sm:$0xff]
    %v366 = vld [vmem:[#allocation8 + $0x28] sm:$0xff]
    %v367 = vld [vmem:[#allocation8 + $0x30] sm:$0xff]
    %v368 = vld [vmem:[#allocation8 + $0x38] sm:$0xff]
    %v369 = vld [vmem:[#allocation8 + $0x40] sm:$0xff]
    %v370 = vld [vmem:[#allocation8 + $0x48] sm:$0xff]
    %v371 = vld [vmem:[#allocation8 + $0x50] sm:$0xff]
    %v372 = vld [vmem:[#allocation8 + $0x58] sm:$0xff]
    %v373 = vld [vmem:[#allocation8 + $0x60] sm:$0xff]
    %v374 = vld [vmem:[#allocation8 + $0x68] sm:$0xff]
    %v375 = vld [vmem:[#allocation8 + $0x70] sm:$0xff]
    %v376 = vld [vmem:[#allocation8 + $0x78] sm:$0xff]
    %377 = vmatpush.msra.mxu0 %v376
    %378 = vmatpush.msra.mxu0 %v375
    %379 = vmatpush.msra.mxu0 %v374
    %380 = vmatpush.msra.mxu0 %v373
    %381 = vmatpush.msra.mxu0 %v372
    %382 = vmatpush.msra.mxu0 %v371
    %383 = vmatpush.msra.mxu0 %v370
    %384 = vmatpush.msra.mxu0 %v369
    %385 = vmatpush.msra.mxu0 %v368
    %386 = vmatpush.msra.mxu0 %v367
    %387 = vmatpush.msra.mxu0 %v366
    %388 = vmatpush.msra.mxu0 %v365
    %389 = vmatpush.msra.mxu0 %v364
    %390 = vmatpush.msra.mxu0 %v363
    %391 = vmatpush.msra.mxu0 %v362
    %392 = vmatpush.msra.mxu0 %v361
    %393 = vmatmul.f32.gmra.mxu0 %v356
    %v394 = vpop.f32.mrf.mxu0
    %v395 = vadd.f32 0.0, %v394
    %396 = vdwg.mxu0
    %v397 = vadd.f32 %v360, %v395
    %v398 = vtanh.pop %v397
    %s399 = scalar_lea.vmem [#allocation9], 56
    %400 = vst [vmem:[%s399] sm:$0xff] %v398
    %401 = vst [vmem:[#allocation2] sm:$0xff] %v398
    // Predicated region
    $region30: #{tpu_custom_call.1} parent=1 // pred_check
      _
    $region31: #{tpu_custom_call.1} parent=1 // pred_check_branch
      %403 = sbr.rel (0) target = $region33
    $region32: #{tpu_custom_call.1} parent=1 // pred_region
      %405 = vsyncadd [#allocation5], 0
      %s406 = sshll.u32 [#allocation9], 4
      %s407 = int_to_ptr.vmem [resolvable:$true] %s406
      %s408 = sshll.u32 %s3, 4
      %s409 = int_to_ptr.hbm [resolvable:$true] %s408
      %414 = dma.vmem_to_hbm [thread:$0]  %s407, 1024, %s409, [#allocation5], 128, 128, 8
    $region33: #{tpu_custom_call.1} parent=1 // pred_fallthru
      _
    // Predicated region
    $region34: #{tpu_custom_call.1} parent=1 // pred_check
      _
    $region35: #{tpu_custom_call.1} parent=1 // pred_check_branch
      %416 = sbr.rel (0) target = $region37
    $region36: #{tpu_custom_call.1} parent=1 // pred_region
      %418 = dma.done [#allocation5], 1024
    $region37: #{tpu_custom_call.1} parent=1 // pred_fallthru
      _
    %419 = vsyncpa [#allocation4], 1
    %420 = vsyncpa [#allocation7], 1
    %421 = vsyncpa [#allocation5], 1

// kernel: tpu_custom_call.1
$region0: #{tpu_custom_call.1}
  #allocation0 [shape = 'u32[]', space=smem, size = 0x4, offset = 0x4, fixed_abs, tag = 'smem constant byte address 0x4 - core index']
  #allocation1 [shape = 'u32[72,128]{1,0:T(1,128)}', space=vmem, size = 0x9000, scoped, tag = 'internal scratch']
  #allocation2 [shape = 'f32[8,128]{1,0:T(8,128)}', space=vmem, size = 0x1000, scoped, tag = 'scratch operand']
  %s0 = inlined_call_operand.hbm [shape: f32[8,8,128], index: 0, kind: input, shape index: {}]
  %s1 = inlined_call_operand.hbm [shape: f32[8,128], index: 1, kind: input, shape index: {}]
  %s2 = inlined_call_operand.hbm [shape: f32[128,128], index: 2, kind: input, shape index: {}]
  %s3 = inlined_call_operand.hbm [shape: f32[8,8,128], index: 3, kind: output, shape index: {}]
  %s4 = sld [smem:[#allocation0]]
  $region38: #{tpu_custom_call.1} parent=0
    _
  %s6 = ssub.s32 1, %s4
  %s7 = scalar_select 0, %s6, %s4
  $region1: #{tpu_custom_call.1} parent=0
    #allocation3 [shape = 'u8[32768]{0}', space=vmem, size = 0x8000, scoped, tag = 'input window, operand 0, single buffered']
    #allocation4 [shape = 's32[1]{0}', space=sflag, size = 0x4, scoped, tag = 'scoped memory for tpu_custom_call.1']
    #allocation5 [shape = 's32[1]{0}', space=sflag, size = 0x4, scoped, tag = 'scoped memory for tpu_custom_call.1']
    #allocation6 [shape = 'u8[4096]{0}', space=vmem, size = 0x1000, scoped, tag = 'input window, operand 1, single buffered']
    #allocation7 [shape = 's32[1]{0}', space=sflag, size = 0x4, scoped, tag = 'scoped memory for tpu_custom_call.1']
    #allocation8 [shape = 'u8[65536]{0}', space=vmem, size = 0x10000, scoped, tag = 'input window, operand 2, single buffered']
    #allocation9 [shape = 'u8[32768]{0}', space=vmem, size = 0x8000, scoped, tag = 'output window, operand 0, single buffered']
    %8 = vsyncpa [#allocation4], 0
    %9 = vsyncpa [#allocation7], 0
    %10 = vsyncpa [#allocation5], 0
    // Predicated region
    $region2: #{tpu_custom_call.1} parent=1 // pred_check
      _
    $region3: #{tpu_custom_call.1} parent=1 // pred_check_branch
      %12 = sbr.rel (0) target = $region5
    $region4: #{tpu_custom_call.1} parent=1 // pred_region
      %14 = vsyncadd [#allocation4], 0
      %s15 = sshll.u32 %s0, 4
      %s16 = int_to_ptr.hbm [resolvable:$true] %s15
      %s17 = sshll.u32 [#allocation3], 4
      %s18 = int_to_ptr.vmem [resolvable:$true] %s17
      %23 = dma.hbm_to_vmem [thread:$0]  %s16, 1024, %s18, [#allocation4], 128, 128, 8
    $region5: #{tpu_custom_call.1} parent=1 // pred_fallthru
      _
    // Predicated region
    $region6: #{tpu_custom_call.1} parent=1 // pred_check
      _
    $region7: #{tpu_custom_call.1} parent=1 // pred_check_branch
      %25 = sbr.rel (0) target = $region9
    $region8: #{tpu_custom_call.1} parent=1 // pred_region
      %27 = vsyncadd [#allocation7], 0
      %s29 = sshll.u32 %s1, 4
      %s30 = int_to_ptr.hbm [resolvable:$true] %s29
      %s31 = sshll.u32 [#allocation6], 4
      %s32 = int_to_ptr.vmem [resolvable:$true] %s31
      %34 = dma.hbm_to_vmem [thread:$0]  %s30, 128, %s32, [#allocation7]
    $region9: #{tpu_custom_call.1} parent=1 // pred_fallthru
      _
    // Predicated region
    $region10: #{tpu_custom_call.1} parent=1 // pred_check
      _
    $region11: #{tpu_custom_call.1} parent=1 // pred_check_branch
      %36 = sbr.rel (0) target = $region13
    $region12: #{tpu_custom_call.1} parent=1 // pred_region
      %38 = vsyncadd [#allocation7], 0
      %s39 = sshll.u32 %s2, 4
      %s40 = int_to_ptr.hbm [resolvable:$true] %s39
      %s41 = sshll.u32 [#allocation8], 4
      %s42 = int_to_ptr.vmem [resolvable:$true] %s41
      %47 = dma.hbm_to_vmem [thread:$0]  %s40, 2048, %s42, [#allocation7], 128, 128, 8
    $region13: #{tpu_custom_call.1} parent=1 // pred_fallthru
      _
    // Predicated region
    $region14: #{tpu_custom_call.1} parent=1 // pred_check
      _
    $region15: #{tpu_custom_call.1} parent=1 // pred_check_branch
      %49 = sbr.rel (0) target = $region17
    $region16: #{tpu_custom_call.1} parent=1 // pred_region
      %51 = dma.done [#allocation4], 1024
    $region17: #{tpu_custom_call.1} parent=1 // pred_fallthru
      _
    // Predicated region
    $region18: #{tpu_custom_call.1} parent=1 // pred_check
      _
    $region19: #{tpu_custom_call.1} parent=1 // pred_check_branch
      %53 = sbr.rel (0) target = $region21
    $region20: #{tpu_custom_call.1} parent=1 // pred_region
      %55 = dma.done [#allocation7], 128
    $region21: #{tpu_custom_call.1} parent=1 // pred_fallthru
      _
    // Predicated region
    $region22: #{tpu_custom_call.1} parent=1 // pred_check
      _
    $region23: #{tpu_custom_call.1} parent=1 // pred_check_branch
      %57 = sbr.rel (0) target = $region25
    $region24: #{tpu_custom_call.1} parent=1 // pred_region
      %59 = dma.done [#allocation7], 2048
    $region25: #{tpu_custom_call.1} parent=1 // pred_fallthru
      _
    %p60 = scmp.eq.s32.totalorder 0, 0
    // Predicated region
    $region26: #{tpu_custom_call.1} parent=1 // pred_check
      %p61 = pneg %p60
    $region27: #{tpu_custom_call.1} parent=1 // pred_check_branch
      %63 = sbr.rel (%p61) target = $region29
    $region28: #{tpu_custom_call.1} parent=1 // pred_region
      %v64 = vld [vmem:[#allocation6] sm:$0xff]
      %65 = vst [vmem:[#allocation2] sm:$0xff] %v64
    $region29: #{tpu_custom_call.1} parent=1 // pred_fallthru
      _
    %v66 = vld [vmem:[#allocation2] sm:$0xff]
    %v67 = vld [vmem:[#allocation3] sm:$0xff]
    %v68 = vld [vmem:[#allocation8] sm:$0xff]
    %v69 = vld [vmem:[#allocation8 + $0x8] sm:$0xff]
    %v70 = vld [vmem:[#allocation8 + $0x10] sm:$0xff]
    %v71 = vld [vmem:[#allocation8 + $0x18] sm:$0xff]
    %v72 = vld [vmem:[#allocation8 + $0x20] sm:$0xff]
    %v73 = vld [vmem:[#allocation8 + $0x28] sm:$0xff]
    %v74 = vld [vmem:[#allocation8 + $0x30] sm:$0xff]
    %v75 = vld [vmem:[#allocation8 + $0x38] sm:$0xff]
    %v76 = vld [vmem:[#allocation8 + $0x40] sm:$0xff]
    %v77 = vld [vmem:[#allocation8 + $0x48] sm:$0xff]
    %v78 = vld [vmem:[#allocation8 + $0x50] sm:$0xff]
    %v79 = vld [vmem:[#allocation8 + $0x58] sm:$0xff]
    %v80 = vld [vmem:[#allocation8 + $0x60] sm:$0xff]
    %v81 = vld [vmem:[#allocation8 + $0x68] sm:$0xff]
    %v82 = vld [vmem:[#allocation8 + $0x70] sm:$0xff]
    %v83 = vld [vmem:[#allocation8 + $0x78] sm:$0xff]
    %84 = vmatpush.msra.mxu0 %v83
    %85 = vmatpush.msra.mxu0 %v82
    %86 = vmatpush.msra.mxu0 %v81
    %87 = vmatpush.msra.mxu0 %v80
    %88 = vmatpush.msra.mxu0 %v79
    %89 = vmatpush.msra.mxu0 %v78
    %90 = vmatpush.msra.mxu0 %v77
    %91 = vmatpush.msra.mxu0 %v76
    %92 = vmatpush.msra.mxu0 %v75
    %93 = vmatpush.msra.mxu0 %v74
    %94 = vmatpush.msra.mxu0 %v73
    %95 = vmatpush.msra.mxu0 %v72
    %96 = vmatpush.msra.mxu0 %v71
    %97 = vmatpush.msra.mxu0 %v70
    %98 = vmatpush.msra.mxu0 %v69
    %99 = vmatpush.msra.mxu0 %v68
    %100 = vmatmul.f32.gmra.mxu0 %v66
    %v101 = vpop.f32.mrf.mxu0
    %v102 = vadd.f32 0.0, %v101
    %103 = vdwg.mxu0
    %v104 = vadd.f32 %v67, %v102
    %v105 = vtanh.pop %v104
    %106 = vst [vmem:[#allocation9] sm:$0xff] %v105
    %s107 = scalar_lea.vmem [#allocation3], 8
    %v108 = vld [vmem:[%s107] sm:$0xff]
    %v109 = vld [vmem:[#allocation8] sm:$0xff]
    %v110 = vld [vmem:[#allocation8 + $0x8] sm:$0xff]
    %v111 = vld [vmem:[#allocation8 + $0x10] sm:$0xff]
    %v112 = vld [vmem:[#allocation8 + $0x18] sm:$0xff]
    %v113 = vld [vmem:[#allocation8 + $0x20] sm:$0xff]
    %v114 = vld [vmem:[#allocation8 + $0x28] sm:$0xff]
    %v115 = vld [vmem:[#allocation8 + $0x30] sm:$0xff]
    %v116 = vld [vmem:[#allocation8 + $0x38] sm:$0xff]
    %v117 = vld [vmem:[#allocation8 + $0x40] sm:$0xff]
    %v118 = vld [vmem:[#allocation8 + $0x48] sm:$0xff]
    %v119 = vld [vmem:[#allocation8 + $0x50] sm:$0xff]
    %v120 = vld [vmem:[#allocation8 + $0x58] sm:$0xff]
    %v121 = vld [vmem:[#allocation8 + $0x60] sm:$0xff]
    %v122 = vld [vmem:[#allocation8 + $0x68] sm:$0xff]
    %v123 = vld [vmem:[#allocation8 + $0x70] sm:$0xff]
    %v124 = vld [vmem:[#allocation8 + $0x78] sm:$0xff]
    %125 = vmatpush.msra.mxu0 %v124
    %126 = vmatpush.msra.mxu0 %v123
    %127 = vmatpush.msra.mxu0 %v122
    %128 = vmatpush.msra.mxu0 %v121
    %129 = vmatpush.msra.mxu0 %v120
    %130 = vmatpush.msra.mxu0 %v119
    %131 = vmatpush.msra.mxu0 %v118
    %132 = vmatpush.msra.mxu0 %v117
    %133 = vmatpush.msra.mxu0 %v116
    %134 = vmatpush.msra.mxu0 %v115
    %135 = vmatpush.msra.mxu0 %v114
    %136 = vmatpush.msra.mxu0 %v113
    %137 = vmatpush.msra.mxu0 %v112
    %138 = vmatpush.msra.mxu0 %v111
    %139 = vmatpush.msra.mxu0 %v110
    %140 = vmatpush.msra.mxu0 %v109
    %141 = vmatmul.f32.gmra.mxu0 %v105
    %v142 = vpop.f32.mrf.mxu0
    %v143 = vadd.f32 0.0, %v142
    %144 = vdwg.mxu0
    %v145 = vadd.f32 %v108, %v143
    %v146 = vtanh.pop %v145
    %s147 = scalar_lea.vmem [#allocation9], 8
    %148 = vst [vmem:[%s147] sm:$0xff] %v146
    %s149 = scalar_lea.vmem [#allocation3], 16
    %v150 = vld [vmem:[%s149] sm:$0xff]
    %v151 = vld [vmem:[#allocation8] sm:$0xff]
    %v152 = vld [vmem:[#allocation8 + $0x8] sm:$0xff]
    %v153 = vld [vmem:[#allocation8 + $0x10] sm:$0xff]
    %v154 = vld [vmem:[#allocation8 + $0x18] sm:$0xff]
    %v155 = vld [vmem:[#allocation8 + $0x20] sm:$0xff]
    %v156 = vld [vmem:[#allocation8 + $0x28] sm:$0xff]
    %v157 = vld [vmem:[#allocation8 + $0x30] sm:$0xff]
    %v158 = vld [vmem:[#allocation8 + $0x38] sm:$0xff]
    %v159 = vld [vmem:[#allocation8 + $0x40] sm:$0xff]
    %v160 = vld [vmem:[#allocation8 + $0x48] sm:$0xff]
    %v161 = vld [vmem:[#allocation8 + $0x50] sm:$0xff]
    %v162 = vld [vmem:[#allocation8 + $0x58] sm:$0xff]
    %v163 = vld [vmem:[#allocation8 + $0x60] sm:$0xff]
    %v164 = vld [vmem:[#allocation8 + $0x68] sm:$0xff]
    %v165 = vld [vmem:[#allocation8 + $0x70] sm:$0xff]
    %v166 = vld [vmem:[#allocation8 + $0x78] sm:$0xff]
    %167 = vmatpush.msra.mxu0 %v166
    %168 = vmatpush.msra.mxu0 %v165
    %169 = vmatpush.msra.mxu0 %v164
    %170 = vmatpush.msra.mxu0 %v163
    %171 = vmatpush.msra.mxu0 %v162
    %172 = vmatpush.msra.mxu0 %v161
    %173 = vmatpush.msra.mxu0 %v160
    %174 = vmatpush.msra.mxu0 %v159
    %175 = vmatpush.msra.mxu0 %v158
    %176 = vmatpush.msra.mxu0 %v157
    %177 = vmatpush.msra.mxu0 %v156
    %178 = vmatpush.msra.mxu0 %v155
    %179 = vmatpush.msra.mxu0 %v154
    %180 = vmatpush.msra.mxu0 %v153
    %181 = vmatpush.msra.mxu0 %v152
    %182 = vmatpush.msra.mxu0 %v151
    %183 = vmatmul.f32.gmra.mxu0 %v146
    %v184 = vpop.f32.mrf.mxu0
    %v185 = vadd.f32 0.0, %v184
    %186 = vdwg.mxu0
    %v187 = vadd.f32 %v150, %v185
    %v188 = vtanh.pop %v187
    %s189 = scalar_lea.vmem [#allocation9], 16
    %190 = vst [vmem:[%s189] sm:$0xff] %v188
    %s191 = scalar_lea.vmem [#allocation3], 24
    %v192 = vld [vmem:[%s191] sm:$0xff]
    %v193 = vld [vmem:[#allocation8] sm:$0xff]
    %v194 = vld [vmem:[#allocation8 + $0x8] sm:$0xff]
    %v195 = vld [vmem:[#allocation8 + $0x10] sm:$0xff]
    %v196 = vld [vmem:[#allocation8 + $0x18] sm:$0xff]
    %v197 = vld [vmem:[#allocation8 + $0x20] sm:$0xff]
    %v198 = vld [vmem:[#allocation8 + $0x28] sm:$0xff]
    %v199 = vld [vmem:[#allocation8 + $0x30] sm:$0xff]
    %v200 = vld [vmem:[#allocation8 + $0x38] sm:$0xff]
    %v201 = vld [vmem:[#allocation8 + $0x40] sm:$0xff]
    %v202 = vld [vmem:[#allocation8 + $0x48] sm:$0xff]
    %v203 = vld [vmem:[#allocation8 + $0x50] sm:$0xff]
    %v204 = vld [vmem:[#allocation8 + $0x58] sm:$0xff]
    %v205 = vld [vmem:[#allocation8 + $0x60] sm:$0xff]
    %v206 = vld [vmem:[#allocation8 + $0x68] sm:$0xff]
    %v207 = vld [vmem:[#allocation8 + $0x70] sm:$0xff]
    %v208 = vld [vmem:[#allocation8 + $0x78] sm:$0xff]
    %209 = vmatpush.msra.mxu0 %v208
    %210 = vmatpush.msra.mxu0 %v207
    %211 = vmatpush.msra.mxu0 %v206
    %212 = vmatpush.msra.mxu0 %v205
    %213 = vmatpush.msra.mxu0 %v204
    %214 = vmatpush.msra.mxu0 %v203
    %215 = vmatpush.msra.mxu0 %v202
    %216 = vmatpush.msra.mxu0 %v201
    %217 = vmatpush.msra.mxu0 %v200
    %218 = vmatpush.msra.mxu0 %v199
    %219 = vmatpush.msra.mxu0 %v198
    %220 = vmatpush.msra.mxu0 %v197
    %221 = vmatpush.msra.mxu0 %v196
    %222 = vmatpush.msra.mxu0 %v195
    %223 = vmatpush.msra.mxu0 %v194
    %224 = vmatpush.msra.mxu0 %v193
    %225 = vmatmul.f32.gmra.mxu0 %v188
    %v226 = vpop.f32.mrf.mxu0
    %v227 = vadd.f32 0.0, %v226
    %228 = vdwg.mxu0
    %v229 = vadd.f32 %v192, %v227
    %v230 = vtanh.pop %v229
    %s231 = scalar_lea.vmem [#allocation9], 24
    %232 = vst [vmem:[%s231] sm:$0xff] %v230
    %s233 = scalar_lea.vmem [#allocation3], 32
    %v234 = vld [vmem:[%s233] sm:$0xff]
    %v235 = vld [vmem:[#allocation8] sm:$0xff]
    %v236 = vld [vmem:[#allocation8 + $0x8] sm:$0xff]
    %v237 = vld [vmem:[#allocation8 + $0x10] sm:$0xff]
    %v238 = vld [vmem:[#allocation8 + $0x18] sm:$0xff]
    %v239 = vld [vmem:[#allocation8 + $0x20] sm:$0xff]
    %v240 = vld [vmem:[#allocation8 + $0x28] sm:$0xff]
    %v241 = vld [vmem:[#allocation8 + $0x30] sm:$0xff]
    %v242 = vld [vmem:[#allocation8 + $0x38] sm:$0xff]
    %v243 = vld [vmem:[#allocation8 + $0x40] sm:$0xff]
    %v244 = vld [vmem:[#allocation8 + $0x48] sm:$0xff]
    %v245 = vld [vmem:[#allocation8 + $0x50] sm:$0xff]
    %v246 = vld [vmem:[#allocation8 + $0x58] sm:$0xff]
    %v247 = vld [vmem:[#allocation8 + $0x60] sm:$0xff]
    %v248 = vld [vmem:[#allocation8 + $0x68] sm:$0xff]
    %v249 = vld [vmem:[#allocation8 + $0x70] sm:$0xff]
    %v250 = vld [vmem:[#allocation8 + $0x78] sm:$0xff]
    %251 = vmatpush.msra.mxu0 %v250
    %252 = vmatpush.msra.mxu0 %v249
    %253 = vmatpush.msra.mxu0 %v248
    %254 = vmatpush.msra.mxu0 %v247
    %255 = vmatpush.msra.mxu0 %v246
    %256 = vmatpush.msra.mxu0 %v245
    %257 = vmatpush.msra.mxu0 %v244
    %258 = vmatpush.msra.mxu0 %v243
    %259 = vmatpush.msra.mxu0 %v242
    %260 = vmatpush.msra.mxu0 %v241
    %261 = vmatpush.msra.mxu0 %v240
    %262 = vmatpush.msra.mxu0 %v239
    %263 = vmatpush.msra.mxu0 %v238
    %264 = vmatpush.msra.mxu0 %v237
    %265 = vmatpush.msra.mxu0 %v236
    %266 = vmatpush.msra.mxu0 %v235
    %267 = vmatmul.f32.gmra.mxu0 %v230
    %v268 = vpop.f32.mrf.mxu0
    %v269 = vadd.f32 0.0, %v268
    %270 = vdwg.mxu0
    %v271 = vadd.f32 %v234, %v269
    %v272 = vtanh.pop %v271
    %s273 = scalar_lea.vmem [#allocation9], 32
    %274 = vst [vmem:[%s273] sm:$0xff] %v272
    %s275 = scalar_lea.vmem [#allocation3], 40
    %v276 = vld [vmem:[%s275] sm:$0xff]
    %v277 = vld [vmem:[#allocation8] sm:$0xff]
    %v278 = vld [vmem:[#allocation8 + $0x8] sm:$0xff]
    %v279 = vld [vmem:[#allocation8 + $0x10] sm:$0xff]
    %v280 = vld [vmem:[#allocation8 + $0x18] sm:$0xff]
    %v281 = vld [vmem:[#allocation8 + $0x20] sm:$0xff]
    %v282 = vld [vmem:[#allocation8 + $0x28] sm:$0xff]
    %v283 = vld [vmem:[#allocation8 + $0x30] sm:$0xff]
    %v284 = vld [vmem:[#allocation8 + $0x38] sm:$0xff]
    %v285 = vld [vmem:[#allocation8 + $0x40] sm:$0xff]
    %v286 = vld [vmem:[#allocation8 + $0x48] sm:$0xff]
    %v287 = vld [vmem:[#allocation8 + $0x50] sm:$0xff]
    %v288 = vld [vmem:[#allocation8 + $0x58] sm:$0xff]
    %v289 = vld [vmem:[#allocation8 + $0x60] sm:$0xff]
    %v290 = vld [vmem:[#allocation8 + $0x68] sm:$0xff]
    %v291 = vld [vmem:[#allocation8 + $0x70] sm:$0xff]
    %v292 = vld [vmem:[#allocation8 + $0x78] sm:$0xff]
    %293 = vmatpush.msra.mxu0 %v292
    %294 = vmatpush.msra.mxu0 %v291
    %295 = vmatpush.msra.mxu0 %v290
    %296 = vmatpush.msra.mxu0 %v289
    %297 = vmatpush.msra.mxu0 %v288
    %298 = vmatpush.msra.mxu0 %v287
    %299 = vmatpush.msra.mxu0 %v286
    %300 = vmatpush.msra.mxu0 %v285
    %301 = vmatpush.msra.mxu0 %v284
    %302 = vmatpush.msra.mxu0 %v283
    %303 = vmatpush.msra.mxu0 %v282
    %304 = vmatpush.msra.mxu0 %v281
    %305 = vmatpush.msra.mxu0 %v280
    %306 = vmatpush.msra.mxu0 %v279
    %307 = vmatpush.msra.mxu0 %v278
    %308 = vmatpush.msra.mxu0 %v277
    %309 = vmatmul.f32.gmra.mxu0 %v272
    %v310 = vpop.f32.mrf.mxu0
    %v311 = vadd.f32 0.0, %v310
    %312 = vdwg.mxu0
    %v313 = vadd.f32 %v276, %v311
    %v314 = vtanh.pop %v313
    %s315 = scalar_lea.vmem [#allocation9], 40
    %316 = vst [vmem:[%s315] sm:$0xff] %v314
    %s317 = scalar_lea.vmem [#allocation3], 48
    %v318 = vld [vmem:[%s317] sm:$0xff]
    %v319 = vld [vmem:[#allocation8] sm:$0xff]
    %v320 = vld [vmem:[#allocation8 + $0x8] sm:$0xff]
    %v321 = vld [vmem:[#allocation8 + $0x10] sm:$0xff]
    %v322 = vld [vmem:[#allocation8 + $0x18] sm:$0xff]
    %v323 = vld [vmem:[#allocation8 + $0x20] sm:$0xff]
    %v324 = vld [vmem:[#allocation8 + $0x28] sm:$0xff]
    %v325 = vld [vmem:[#allocation8 + $0x30] sm:$0xff]
    %v326 = vld [vmem:[#allocation8 + $0x38] sm:$0xff]
    %v327 = vld [vmem:[#allocation8 + $0x40] sm:$0xff]
    %v328 = vld [vmem:[#allocation8 + $0x48] sm:$0xff]
    %v329 = vld [vmem:[#allocation8 + $0x50] sm:$0xff]
    %v330 = vld [vmem:[#allocation8 + $0x58] sm:$0xff]
    %v331 = vld [vmem:[#allocation8 + $0x60] sm:$0xff]
    %v332 = vld [vmem:[#allocation8 + $0x68] sm:$0xff]
    %v333 = vld [vmem:[#allocation8 + $0x70] sm:$0xff]
    %v334 = vld [vmem:[#allocation8 + $0x78] sm:$0xff]
    %335 = vmatpush.msra.mxu0 %v334
    %336 = vmatpush.msra.mxu0 %v333
    %337 = vmatpush.msra.mxu0 %v332
    %338 = vmatpush.msra.mxu0 %v331
    %339 = vmatpush.msra.mxu0 %v330
    %340 = vmatpush.msra.mxu0 %v329
    %341 = vmatpush.msra.mxu0 %v328
    %342 = vmatpush.msra.mxu0 %v327
    %343 = vmatpush.msra.mxu0 %v326
    %344 = vmatpush.msra.mxu0 %v325
    %345 = vmatpush.msra.mxu0 %v324
    %346 = vmatpush.msra.mxu0 %v323
    %347 = vmatpush.msra.mxu0 %v322
    %348 = vmatpush.msra.mxu0 %v321
    %349 = vmatpush.msra.mxu0 %v320
    %350 = vmatpush.msra.mxu0 %v319
    %351 = vmatmul.f32.gmra.mxu0 %v314
    %v352 = vpop.f32.mrf.mxu0
    %v353 = vadd.f32 0.0, %v352
    %354 = vdwg.mxu0
    %v355 = vadd.f32 %v318, %v353
    %v356 = vtanh.pop %v355
    %s357 = scalar_lea.vmem [#allocation9], 48
    %358 = vst [vmem:[%s357] sm:$0xff] %v356
    %s359 = scalar_lea.vmem [#allocation3], 56
    %v360 = vld [vmem:[%s359] sm:$0xff]
    %v361 = vld [vmem:[#allocation8] sm:$0xff]
    %v362 = vld [vmem:[#allocation8 + $0x8] sm:$0xff]
    %v363 = vld [vmem:[#allocation8 + $0x10] sm:$0xff]
    %v364 = vld [vmem:[#allocation8 + $0x18] sm:$0xff]
    %v365 = vld [vmem:[#allocation8 + $0x20] sm:$0xff]
    %v366 = vld [vmem:[#allocation8 + $0x28] sm:$0xff]
    %v367 = vld [vmem:[#allocation8 + $0x30] sm:$0xff]
    %v368 = vld [vmem:[#allocation8 + $0x38] sm:$0xff]
    %v369 = vld [vmem:[#allocation8 + $0x40] sm:$0xff]
    %v370 = vld [vmem:[#allocation8 + $0x48] sm:$0xff]
    %v371 = vld [vmem:[#allocation8 + $0x50] sm:$0xff]
    %v372 = vld [vmem:[#allocation8 + $0x58] sm:$0xff]
    %v373 = vld [vmem:[#allocation8 + $0x60] sm:$0xff]
    %v374 = vld [vmem:[#allocation8 + $0x68] sm:$0xff]
    %v375 = vld [vmem:[#allocation8 + $0x70] sm:$0xff]
    %v376 = vld [vmem:[#allocation8 + $0x78] sm:$0xff]
    %377 = vmatpush.msra.mxu0 %v376
    %378 = vmatpush.msra.mxu0 %v375
    %379 = vmatpush.msra.mxu0 %v374
    %380 = vmatpush.msra.mxu0 %v373
    %381 = vmatpush.msra.mxu0 %v372
    %382 = vmatpush.msra.mxu0 %v371
    %383 = vmatpush.msra.mxu0 %v370
    %384 = vmatpush.msra.mxu0 %v369
    %385 = vmatpush.msra.mxu0 %v368
    %386 = vmatpush.msra.mxu0 %v367
    %387 = vmatpush.msra.mxu0 %v366
    %388 = vmatpush.msra.mxu0 %v365
    %389 = vmatpush.msra.mxu0 %v364
    %390 = vmatpush.msra.mxu0 %v363
    %391 = vmatpush.msra.mxu0 %v362
    %392 = vmatpush.msra.mxu0 %v361
    %393 = vmatmul.f32.gmra.mxu0 %v356
    %v394 = vpop.f32.mrf.mxu0
    %v395 = vadd.f32 0.0, %v394
    %396 = vdwg.mxu0
    %v397 = vadd.f32 %v360, %v395
    %v398 = vtanh.pop %v397
    %s399 = scalar_lea.vmem [#allocation9], 56
    %400 = vst [vmem:[%s399] sm:$0xff] %v398
    %401 = vst [vmem:[#allocation2] sm:$0xff] %v398
    // Predicated region
    $region30: #{tpu_custom_call.1} parent=1 // pred_check
      _
    $region31: #{tpu_custom_call.1} parent=1 // pred_check_branch
      %403 = sbr.rel (0) target = $region33
    $region32: #{tpu_custom_call.1} parent=1 // pred_region
      %405 = vsyncadd [#allocation5], 0
      %s406 = sshll.u32 [#allocation9], 4
      %s407 = int_to_ptr.vmem [resolvable:$true] %s406
      %s408 = sshll.u32 %s3, 4
      %s409 = int_to_ptr.hbm [resolvable:$true] %s408
      %414 = dma.vmem_to_hbm [thread:$0]  %s407, 1024, %s409, [#allocation5], 128, 128, 8
    $region33: #{tpu_custom_call.1} parent=1 // pred_fallthru
      _
    // Predicated region
    $region34: #{tpu_custom_call.1} parent=1 // pred_check
      _
    $region35: #{tpu_custom_call.1} parent=1 // pred_check_branch
      %416 = sbr.rel (0) target = $region37
    $region36: #{tpu_custom_call.1} parent=1 // pred_region
      %418 = dma.done [#allocation5], 1024
    $region37: #{tpu_custom_call.1} parent=1 // pred_fallthru
      _
    %419 = vsyncpa [#allocation4], 1
    %420 = vsyncpa [#allocation7], 1
    %421 = vsyncpa [#allocation5], 1

</llo_original>
